<compile_context>
chip_gen: v7x
topology: tpu7x:2x2x1
jax: 0.10.0
libtpu: 0.0.40
codegen_flags: <defaults>
</compile_context>

<pallas_src>
import functools

import jax
import jax.numpy as jnp
from jax.experimental import pallas as pl
from jax.experimental.pallas import tpu as pltpu


def _round_up(x, m):
    return ((x + m - 1) // m) * m


def _cdiv(a, b):
    return (a + b - 1) // b


# ----------------------------- Pallas kernels ---------------------------------
def _gated_conv_packed_kernel(p_ref, w_ref, b_ref, o_ref, *, half):
    # p_ref: (TM, KP)  bf16 im2col patch rows (zero padded along K)
    # w_ref: (KP, 128) bf16 packed weight: feature cols [0, OC), gating cols [half, half+OC)
    # b_ref: (1, 128)  f32 packed biases (same column layout)
    # o_ref: (TM, 128) bf16 gated output (only cols [0, OC) are real; sliced outside)
    r = jnp.dot(p_ref[...], w_ref[...], preferred_element_type=jnp.float32)
    r = r + b_ref[...]
    feat = jnp.where(r >= 0, r, 0.2 * r)               # LeakyReLU(0.2) (feature columns)
    g = pltpu.roll(r, shift=half, axis=1)               # gate columns -> under feature columns (XLU)
    sig = 0.5 * jnp.tanh(0.5 * g) + 0.5                 # exact sigmoid, one EUP push per element
    o_ref[...] = (feat * sig).astype(o_ref.dtype)


def _gated_conv_split_kernel(p_ref, wf_ref, wg_ref, bf_ref, bg_ref, o_ref):
    # Fallback for 2*OC > 128: two MXU matmuls sharing one patch tile.
    p = p_ref[...]
    feat = jnp.dot(p, wf_ref[...], preferred_element_type=jnp.float32) + bf_ref[...]
    gate = jnp.dot(p, wg_ref[...], preferred_element_type=jnp.float32) + bg_ref[...]
    feat = jnp.where(feat >= 0, feat, 0.2 * feat)
    sig = 0.5 * jnp.tanh(0.5 * gate) + 0.5
    o_ref[...] = (feat * sig).astype(o_ref.dtype)


# ----------------------------- tiling / VMEM budget ---------------------------
def _choose_tiles(M, KP, OCP, n_weights, target_tm=1024,
                  vmem_budget_bytes=24 * 1024 * 1024):
    """Pick an M tile so double-buffered in/out tiles + weights + f32 epilogue temps
    fit the budget; force an even number of >=4 grid steps when M allows it."""
    def step_bytes(tm):
        patch = 2 * tm * KP * 2                       # double-buffered bf16 patch tile
        outb = 2 * tm * OCP * 2                       # double-buffered bf16 output tile
        wts = n_weights * 2 * KP * OCP * 2            # weights (default double-buffered)
        bias = n_weights * 2 * OCP * 4
        temps = (n_weights + 2) * tm * OCP * 4        # f32 epilogue temporaries
        return patch + outb + wts + bias + temps

    fixed = n_weights * (2 * KP * OCP * 2 + 2 * OCP * 4)
    per_row = 2 * KP * 2 + 2 * OCP * 2 + (n_weights + 2) * OCP * 4
    tm_cap = max(16, (vmem_budget_bytes - fixed) // per_row)
    tm = min(target_tm, tm_cap, _round_up(M, 16))
    tm = _round_up(max(tm, 16), 16)                   # bf16 sublane packing -> multiple of 16

    steps = _cdiv(M, tm)
    if steps > 1:
        # >= 4 steps for steady-state double-buffering; even count so v7x's two
        # "parallel"-sharded TensorCores each get a balanced, pipelined share.
        steps = max(steps, 4)
        if steps % 2:
            steps += 1
        tm = _round_up(_cdiv(M, steps), 16)
        steps = _cdiv(M, tm)
        if steps % 2:
            steps += 1
    MP = steps * tm

    vmem_limit = int(min(48 * 1024 * 1024,            # headroom vs v7x's 64 MiB physical VMEM
                         max(16 * 1024 * 1024, step_bytes(tm) + 8 * 1024 * 1024)))
    return tm, MP, vmem_limit


# ----------------------------- pallas_call wrapper -----------------------------
def _gated_conv_matmul(patches, wf_flat, wg_flat, b_feat, b_gate):
    """patches: (M, K) bf16; w*_flat: (K, OC) f32 (already spectrally normalized);
    b_*: (OC,) f32  ->  (M, OC) bf16 gated rows."""
    M, K = patches.shape
    OC = wf_flat.shape[1]
    KP = _round_up(K, 128)

    packed = (2 * OC) <= 128
    if packed:
        OCP = 128
        half = OCP // 2
        w = jnp.zeros((KP, OCP), jnp.bfloat16)
        w = w.at[:K, :OC].set(wf_flat.astype(jnp.bfloat16))
        w = w.at[:K, half:half + OC].set(wg_flat.astype(jnp.bfloat16))
        b = jnp.zeros((1, OCP), jnp.float32)
        b = b.at[0, :OC].set(b_feat.astype(jnp.float32))
        b = b.at[0, half:half + OC].set(b_gate.astype(jnp.float32))
        operands = (w, b)
        op_specs = [pl.BlockSpec((KP, OCP), lambda i: (0, 0)),
                    pl.BlockSpec((1, OCP), lambda i: (0, 0))]
        kernel = functools.partial(_gated_conv_packed_kernel, half=half)
        n_weights = 1
    else:
        OCP = _round_up(OC, 128)
        wf = jnp.pad(wf_flat, ((0, KP - K), (0, OCP - OC))).astype(jnp.bfloat16)
        wg = jnp.pad(wg_flat, ((0, KP - K), (0, OCP - OC))).astype(jnp.bfloat16)
        bf = jnp.pad(b_feat, (0, OCP - OC)).reshape(1, OCP).astype(jnp.float32)
        bg = jnp.pad(b_gate, (0, OCP - OC)).reshape(1, OCP).astype(jnp.float32)
        operands = (wf, wg, bf, bg)
        op_specs = [pl.BlockSpec((KP, OCP), lambda i: (0, 0)),
                    pl.BlockSpec((KP, OCP), lambda i: (0, 0)),
                    pl.BlockSpec((1, OCP), lambda i: (0, 0)),
                    pl.BlockSpec((1, OCP), lambda i: (0, 0))]
        kernel = _gated_conv_split_kernel
        n_weights = 2

    tm, MP, vmem_limit = _choose_tiles(M, KP, OCP, n_weights)
    # patches are already bf16 (cast happened before im2col) -> pad stays bf16.
    p = jnp.pad(patches, ((0, MP - M), (0, KP - K)))

    out = pl.pallas_call(
        kernel,
        out_shape=jax.ShapeDtypeStruct((MP, OCP), jnp.bfloat16),
        grid_spec=pltpu.PrefetchScalarGridSpec(
            num_scalar_prefetch=0,
            grid=(MP // tm,),
            in_specs=[pl.BlockSpec((tm, KP), lambda i: (i, 0))] + op_specs,
            out_specs=pl.BlockSpec((tm, OCP), lambda i: (i, 0)),
        ),
        compiler_params=pltpu.CompilerParams(
            dimension_semantics=("parallel",),
            vmem_limit_bytes=vmem_limit,
        ),
    )(p, *operands)
    return out[:M, :OC]


# ----------------------------- glue (JAX) -------------------------------------
def _im2col_3d_cl(x_cl, k, stride, pad):
    # x_cl: (N, D, H, W, C) channels-last. Returns (N*Do*Ho*Wo, k^3*C), (Do, Ho, Wo).
    N, D, H, W, C = x_cl.shape
    xp = jnp.pad(x_cl, ((0, 0), (pad, pad), (pad, pad), (pad, pad), (0, 0)))
    Do = (D + 2 * pad - k) // stride + 1
    Ho = (H + 2 * pad - k) // stride + 1
    Wo = (W + 2 * pad - k) // stride + 1
    cols = []
    for kd in range(k):
        for kh in range(k):
            for kw in range(k):
                cols.append(xp[:,
                               kd:kd + stride * Do:stride,
                               kh:kh + stride * Ho:stride,
                               kw:kw + stride * Wo:stride, :])
    # (N, Do, Ho, Wo, k^3, C): tap-major / channel-minor rows, matching the
    # (kd, kh, kw, C, OC) weight flattening. No big 6-D transpose needed.
    patches = jnp.stack(cols, axis=4)
    return patches.reshape(N * Do * Ho * Wo, k * k * k * C), (Do, Ho, Wo)


def _spectral_normalize(w_mat, n_iters=10):
    # w_mat: (OC, K) — same view PyTorch's spectral_norm uses for Conv3d.
    # TODO(synk): PyTorch keeps a persistent `u` buffer and runs ONE power iteration
    # per forward (u/v detached); here we use a deterministic fixed-seed 10-step
    # iteration, which converges to the same sigma but is not bit-identical.
    u = jax.random.normal(jax.random.PRNGKey(42), (w_mat.shape[0],), dtype=jnp.float32)
    u = u / (jnp.linalg.norm(u) + 1e-12)
    v = None
    for _ in range(n_iters):
        v = w_mat.T @ u
        v = v / (jnp.linalg.norm(v) + 1e-12)
        u = w_mat @ v
        u = u / (jnp.linalg.norm(u) + 1e-12)
    sigma = u @ (w_mat @ v)
    return w_mat / sigma


def _flatten_conv_weight(w):
    # (OC, C, kd, kh, kw) -> (k^3*C, OC), tap-major / channel-minor rows.
    OC = w.shape[0]
    return jnp.transpose(w, (2, 3, 4, 1, 0)).reshape(-1, OC)


def gated_conv_forward(x, w_feat, b_feat, w_gate, b_gate, *,
                       kernel_size, stride=1, padding=0, out_dtype=jnp.float32):
    """GatedConv forward (norm='SN', dilation=1, groups=1).
    x: (N, C, D, H, W); w_*: (OC, C, k, k, k); b_*: (OC,)."""
    N, Cin, D, H, W = x.shape
    OC = w_feat.shape[0]
    k = kernel_size

    # Spectral norm on both conv weights in f32 (norm='SN' -> no norm layer afterwards).
    wf_sn = _spectral_normalize(w_feat.reshape(OC, -1)).reshape(w_feat.shape)
    wg_sn = _spectral_normalize(w_gate.reshape(OC, -1)).reshape(w_gate.shape)
    wf_flat = _flatten_conv_weight(wf_sn)
    wg_flat = _flatten_conv_weight(wg_sn)

    # Channels-last internal layout; cast to bf16 BEFORE im2col/pad so the big patch
    # matrix is never materialized in f32.
    x_cl = jnp.transpose(x.astype(jnp.bfloat16), (0, 2, 3, 4, 1))
    patches, (Do, Ho, Wo) = _im2col_3d_cl(x_cl, k, stride, padding)

    out_rows = _gated_conv_matmul(patches, wf_flat, wg_flat, b_feat, b_gate)
    out = out_rows.reshape(N, Do, Ho, Wo, OC).astype(out_dtype)
    return jnp.transpose(out, (0, 4, 1, 2, 3))   # back to NCDHW at the boundary


# ----------------------------- main -------------------------------------------
if __name__ == "__main__":
    key = jax.random.PRNGKey(0)
    kx, kwf, kbf, kwg, kbg = jax.random.split(key, 5)

    # small shapes consistent with the module (Conv3d on NCDHW video tensors)
    N, Cin, D, H, W = 2, 4, 8, 16, 16
    OC, ksize, stride, padding = 8, 3, 1, 1

    x = jax.random.normal(kx, (N, Cin, D, H, W), dtype=jnp.float32)
    w_feat = jax.random.normal(kwf, (OC, Cin, ksize, ksize, ksize), dtype=jnp.float32) * 0.1
    b_feat = jax.random.normal(kbf, (OC,), dtype=jnp.float32) * 0.05
    w_gate = jax.random.normal(kwg, (OC, Cin, ksize, ksize, ksize), dtype=jnp.float32) * 0.1
    b_gate = jax.random.normal(kbg, (OC,), dtype=jnp.float32) * 0.05

    fwd = jax.jit(functools.partial(gated_conv_forward,
                                    kernel_size=ksize, stride=stride, padding=padding))
    out = jax.block_until_ready(fwd(x, w_feat, b_feat, w_gate, b_gate))

    # ---- reference (plain JAX): same bf16-quantized matmul inputs, f32 math,
    #      exact sigmoid. The kernel additionally rounds its output to bf16.
    wf_sn = _spectral_normalize(w_feat.reshape(OC, -1)).reshape(w_feat.shape)
    wg_sn = _spectral_normalize(w_gate.reshape(OC, -1)).reshape(w_gate.shape)
    wf_flat = _flatten_conv_weight(wf_sn)
    wg_flat = _flatten_conv_weight(wg_sn)

    x_cl = jnp.transpose(x.astype(jnp.bfloat16), (0, 2, 3, 4, 1))
    patches, (Do, Ho, Wo) = _im2col_3d_cl(x_cl, ksize, stride, padding)
    pq = patches.astype(jnp.float32)
    wfq = wf_flat.astype(jnp.bfloat16).astype(jnp.float32)
    wgq = wg_flat.astype(jnp.bfloat16).astype(jnp.float32)
    hp = jax.lax.Precision.HIGHEST
    feat = jnp.dot(pq, wfq, precision=hp) + b_feat[None, :]
    gate = jnp.dot(pq, wgq, precision=hp) + b_gate[None, :]
    feat = jnp.where(feat >= 0, feat, 0.2 * feat)
    ref_rows = feat * jax.nn.sigmoid(gate)
    ref = jnp.transpose(ref_rows.reshape(N, Do, Ho, Wo, OC), (0, 4, 1, 2, 3))

    assert out.shape == (N, OC, Do, Ho, Wo), out.shape
    # Error budget: bf16 output rounding (<= 2^-8 relative) + f32 accumulation-order slack.
    tol = (2.0 ** -8) * jnp.abs(ref) + 2e-3
    err = jnp.abs(out - ref)
    assert bool(jnp.all(err <= tol)), (
        f"max abs err {float(jnp.max(err))}, max excess over tol {float(jnp.max(err - tol))}")

    print("KERNEL_OK")
</pallas_src>

<mosaic_0001>
module attributes {stable_mosaic.version = 11 : i64} {
  func.func @_gated_conv_packed_kernel(%arg0: i32, %arg1: memref<1024x128xbf16, #tpu.memory_space<vmem>>, %arg2: memref<128x128xbf16, #tpu.memory_space<vmem>>, %arg3: memref<1x128xf32, #tpu.memory_space<vmem>>, %arg4: memref<1024x128xbf16, #tpu.memory_space<vmem>>) attributes {dimension_semantics = [#tpu.dimension_semantics<parallel>], iteration_bounds = array<i64: 4>, scalar_prefetch = 0 : i64, scratch_operands = 0 : i64, tpu.core_type = #tpu.core_type<tc>, window_params = [{transform_indices = @transform_0, window_bounds = array<i64: 1024, 128>}, {pipeline_mode = #tpu.pipeline_mode<synchronous>, transform_indices = @transform_1, window_bounds = array<i64: 128, 128>}, {pipeline_mode = #tpu.pipeline_mode<synchronous>, transform_indices = @transform_2, window_bounds = array<i64: 1, 128>}, {transform_indices = @transform_3, window_bounds = array<i64: 1024, 128>}]} {
    %c0 = arith.constant 0 : index
    %c0_0 = arith.constant 0 : index
    %0 = vector.load %arg1[%c0, %c0_0] : memref<1024x128xbf16, #tpu.memory_space<vmem>>, vector<1024x128xbf16>
    %c0_1 = arith.constant 0 : index
    %c0_2 = arith.constant 0 : index
    %1 = vector.load %arg2[%c0_1, %c0_2] : memref<128x128xbf16, #tpu.memory_space<vmem>>, vector<128x128xbf16>
    %cst = arith.constant dense<0.000000e+00> : vector<1024x128xf32>
    %2 = tpu.matmul %0, %1, %cst {dimension_numbers = #tpu.dot_dimension_numbers<[1], [0], [0], [1], [0, 0, 1, 1], [], []>} : vector<1024x128xbf16>, vector<128x128xbf16>, vector<1024x128xf32> -> vector<1024x128xf32>
    %c0_3 = arith.constant 0 : index
    %c0_4 = arith.constant 0 : index
    %3 = vector.load %arg3[%c0_3, %c0_4] : memref<1x128xf32, #tpu.memory_space<vmem>>, vector<1x128xf32>
    %4 = vector.broadcast %3 : vector<1x128xf32> to vector<1024x128xf32>
    %5 = arith.addf %2, %4 : vector<1024x128xf32>
    %cst_5 = arith.constant 0.000000e+00 : f32
    %6 = vector.broadcast %cst_5 : f32 to vector<1024x128xf32>
    %7 = arith.cmpf oge, %5, %6 : vector<1024x128xf32>
    %cst_6 = arith.constant 2.000000e-01 : f32
    %8 = vector.broadcast %cst_6 : f32 to vector<1024x128xf32>
    %9 = arith.mulf %8, %5 : vector<1024x128xf32>
    %10 = arith.select %7, %5, %9 : vector<1024x128xi1>, vector<1024x128xf32>
    %c64_i32 = arith.constant 64 : i32
    %11 = tpu.dynamic_rotate %5 by %c64_i32 dim 1 : vector<1024x128xf32>, i32 -> vector<1024x128xf32>
    %cst_7 = arith.constant 5.000000e-01 : f32
    %12 = vector.broadcast %cst_7 : f32 to vector<1024x128xf32>
    %13 = arith.mulf %12, %11 : vector<1024x128xf32>
    %14 = math.tanh %13 : vector<1024x128xf32>
    %cst_8 = arith.constant 5.000000e-01 : f32
    %15 = vector.broadcast %cst_8 : f32 to vector<1024x128xf32>
    %16 = arith.mulf %15, %14 : vector<1024x128xf32>
    %cst_9 = arith.constant 5.000000e-01 : f32
    %17 = vector.broadcast %cst_9 : f32 to vector<1024x128xf32>
    %18 = arith.addf %16, %17 : vector<1024x128xf32>
    %19 = arith.mulf %10, %18 : vector<1024x128xf32>
    %20 = arith.truncf %19 : vector<1024x128xf32> to vector<1024x128xbf16>
    %c0_10 = arith.constant 0 : index
    %c0_11 = arith.constant 0 : index
    %21 = vector.load %arg4[%c0_10, %c0_11] : memref<1024x128xbf16, #tpu.memory_space<vmem>>, vector<1024x128xbf16>
    tpu.vector_store %arg4[%c0_10, %c0_11], %20 {strides = array<i32>} : memref<1024x128xbf16, #tpu.memory_space<vmem>>, vector<1024x128xbf16>,
    return
  }
  func.func @transform_0(%arg0: i32) -> (i32, i32) {
    %c0_i32 = arith.constant 0 : i32
    %c0_i32_0 = arith.constant 0 : i32
    return %arg0, %c0_i32 : i32, i32
  }
  func.func @transform_1(%arg0: i32) -> (i32, i32) {
    %c0_i32 = arith.constant 0 : i32
    %c0_i32_0 = arith.constant 0 : i32
    %c0_i32_1 = arith.constant 0 : i32
    return %c0_i32, %c0_i32_0 : i32, i32
  }
  func.func @transform_2(%arg0: i32) -> (i32, i32) {
    %c0_i32 = arith.constant 0 : i32
    %c0_i32_0 = arith.constant 0 : i32
    %c0_i32_1 = arith.constant 0 : i32
    return %c0_i32, %c0_i32_0 : i32, i32
  }
  func.func @transform_3(%arg0: i32) -> (i32, i32) {
    %c0_i32 = arith.constant 0 : i32
    %c0_i32_0 = arith.constant 0 : i32
    return %arg0, %c0_i32 : i32, i32
  }
}

</mosaic_0001>

<llo_original>
// kernel: gated_conv_forward.1
$region0: #{gated_conv_forward.1}
  #allocation0 [shape = 'u32[]', space=smem, size = 0x4, offset = 0x4, fixed_abs, tag = 'smem constant byte address 0x4 - core index']
  #allocation1 [shape = 'u32[144,128]{1,0:T(1,128)}', space=vmem, size = 0x12000, scoped, tag = 'internal scratch']
  %s0 = inlined_call_operand.vmem [shape: bf16[4096,128], index: 0, kind: input, shape index: {}]
  %s1 = inlined_call_operand.vmem [shape: bf16[128,128], index: 1, kind: input, shape index: {}]
  %s2 = inlined_call_operand.vmem [shape: f32[1,128], index: 2, kind: input, shape index: {}]
  %s3 = inlined_call_operand.vmem [shape: bf16[4096,128], index: 3, kind: output, shape index: {}]
  %s4 = sld [smem:[#allocation0]]
  $region45: #{gated_conv_forward.1} parent=0
    _
  %s6 = ssub.s32 1, %s4
  %s7 = scalar_select 0, %s6, %s4
  loop: start=0, step=1, limit=6
  $region2: #{gated_conv_forward.1} parent=0 // loop_pre_header
    _
  $region3: #{gated_conv_forward.1} parent=0 // loop_header
    %s9 = sphi 0, %s13
    %p10 = scmp.ge.s32.totalorder %s9, 6
    %s19 = sphi 0, %s21
    %s22 = sphi 0, %s19
    %s23 = sphi 0, %s22
    %s39 = sphi 0, %s23
    %s43 = sphi 0, %s43
    %s45 = sphi 0, %s43
    %s46 = sphi 0, %s45
    %s60 = sphi 0, %s46
    %s64 = sphi 0, %s64
    %s66 = sphi 0, %s64
    %s67 = sphi 0, %s66
    %s81 = sphi 0, %s67
    %s87 = sphi 0, %s89
    %s90 = sphi 0, %s87
    %s91 = sphi 0, %s90
    %s107 = sphi 0, %s91
  $region4: #{gated_conv_forward.1} parent=0 // loop_header_branch
    %12 = sbr.rel (%p10) target = $region8
  $region5: #{gated_conv_forward.1} parent=0 // loop_body
    %s14 = ssub.s32 %s9, 1
    %s15 = ssub.s32 %s9, 2
    %s16 = sadd.s32 %s9, 1
    %s17 = ssub.s32 %s9, %s16
    %p18 = scmp.eq.s32.totalorder %s17, 0
    %s20 = sadd.s32 %s19, 1
    %s21 = scalar_select %p18, %s19, %s20
    %p24 = pneg %p18
    %p25 = scmp.eq.s32.totalorder %s9, 3
    %p26 = por %p24, %p25
    %p27 = scmp.ne.s32.totalorder %s19, %s22
    %p28 = scmp.eq.s32.totalorder %s9, 0
    %p29 = por %p27, %p28
    %p30 = scmp.ne.s32.totalorder %s19, %s22
    %p31 = scmp.eq.s32.totalorder %s14, 3
    %p32 = por %p30, %p31
    %p33 = scmp.ne.s32.totalorder %s22, %s23
    %p34 = scmp.eq.s32.totalorder %s14, 0
    %p35 = por %p33, %p34
    %p36 = scmp.ne.s32.totalorder %s22, %s23
    %p37 = scmp.eq.s32.totalorder %s15, 3
    %p38 = por %p36, %p37
    %p40 = scmp.ne.s32.totalorder %s23, %s39
    %p41 = scmp.eq.s32.totalorder %s15, 0
    %p42 = por %p40, %p41
    %s44 = sadd.s32 %s43, 1
    %p47 = scmp.eq.s32.totalorder %s9, 3
    %p48 = scmp.ne.s32.totalorder %s43, %s45
    %p49 = scmp.eq.s32.totalorder %s9, 0
    %p50 = por %p48, %p49
    %p51 = scmp.ne.s32.totalorder %s43, %s45
    %p52 = scmp.eq.s32.totalorder %s14, 3
    %p53 = por %p51, %p52
    %p54 = scmp.ne.s32.totalorder %s45, %s46
    %p55 = scmp.eq.s32.totalorder %s14, 0
    %p56 = por %p54, %p55
    %p57 = scmp.ne.s32.totalorder %s45, %s46
    %p58 = scmp.eq.s32.totalorder %s15, 3
    %p59 = por %p57, %p58
    %p61 = scmp.ne.s32.totalorder %s46, %s60
    %p62 = scmp.eq.s32.totalorder %s15, 0
    %p63 = por %p61, %p62
    %s65 = sadd.s32 %s64, 1
    %p68 = scmp.eq.s32.totalorder %s9, 3
    %p69 = scmp.ne.s32.totalorder %s64, %s66
    %p70 = scmp.eq.s32.totalorder %s9, 0
    %p71 = por %p69, %p70
    %p72 = scmp.ne.s32.totalorder %s64, %s66
    %p73 = scmp.eq.s32.totalorder %s14, 3
    %p74 = por %p72, %p73
    %p75 = scmp.ne.s32.totalorder %s66, %s67
    %p76 = scmp.eq.s32.totalorder %s14, 0
    %p77 = por %p75, %p76
    %p78 = scmp.ne.s32.totalorder %s66, %s67
    %p79 = scmp.eq.s32.totalorder %s15, 3
    %p80 = por %p78, %p79
    %p82 = scmp.ne.s32.totalorder %s67, %s81
    %p83 = scmp.eq.s32.totalorder %s15, 0
    %p84 = por %p82, %p83
    %s85 = ssub.s32 %s9, %s16
    %p86 = scmp.eq.s32.totalorder %s85, 0
    %s88 = sadd.s32 %s87, 1
    %s89 = scalar_select %p86, %s87, %s88
    %p92 = pneg %p86
    %p93 = scmp.eq.s32.totalorder %s9, 3
    %p94 = por %p92, %p93
    %p95 = scmp.ne.s32.totalorder %s87, %s90
    %p96 = scmp.eq.s32.totalorder %s9, 0
    %p97 = por %p95, %p96
    %p98 = scmp.ne.s32.totalorder %s87, %s90
    %p99 = scmp.eq.s32.totalorder %s14, 3
    %p100 = por %p98, %p99
    %p101 = scmp.ne.s32.totalorder %s90, %s91
    %p102 = scmp.eq.s32.totalorder %s14, 0
    %p103 = por %p101, %p102
    %p104 = scmp.ne.s32.totalorder %s90, %s91
    %p105 = scmp.eq.s32.totalorder %s15, 3
    %p106 = por %p104, %p105
    %p108 = scmp.ne.s32.totalorder %s91, %s107
    %p109 = scmp.eq.s32.totalorder %s15, 0
    %p110 = por %p108, %p109
    %p111 = scmp.le.s32.totalorder 1, %s9
    %p112 = scmp.lt.s32.totalorder %s9, 5
    %p113 = pnand %p111, %p112
    %p114 = pneg %p113
    // Predicated region
    $region9: #{gated_conv_forward.1} parent=5 // pred_check
      _
    $region10: #{gated_conv_forward.1} parent=5 // pred_check_branch
      %116 = sbr.rel (%p113) target = $region12
    $region11: #{gated_conv_forward.1} parent=5 // pred_region
      %s117 = ssub.s32 %s9, 1
      // Predicated region
      $region13: #{gated_conv_forward.1} parent=11 // pred_check
        %p118 = pneg %p56
      $region14: #{gated_conv_forward.1} parent=11 // pred_check_branch
        %120 = sbr.rel (%p118) target = $region16
      $region15: #{gated_conv_forward.1} parent=11 // pred_region
        _
      $region16: #{gated_conv_forward.1} parent=11 // pred_fallthru
        _
      // Predicated region
      $region17: #{gated_conv_forward.1} parent=11 // pred_check
        %p121 = pneg %p77
      $region18: #{gated_conv_forward.1} parent=11 // pred_check_branch
        %123 = sbr.rel (%p121) target = $region20
      $region19: #{gated_conv_forward.1} parent=11 // pred_region
        _
      $region20: #{gated_conv_forward.1} parent=11 // pred_fallthru
        _
    $region12: #{gated_conv_forward.1} parent=5 // pred_fallthru
      _
    %p124 = scmp.lt.s32.totalorder %s9, 4
    // Predicated region
    $region21: #{gated_conv_forward.1} parent=5 // pred_check
      %p125 = pneg %p124
    $region22: #{gated_conv_forward.1} parent=5 // pred_check_branch
      %127 = sbr.rel (%p125) target = $region24
    $region23: #{gated_conv_forward.1} parent=5 // pred_region
      // Predicated region
      $region25: #{gated_conv_forward.1} parent=23 // pred_check
        %p128 = pneg %p29
      $region26: #{gated_conv_forward.1} parent=23 // pred_check_branch
        %130 = sbr.rel (%p128) target = $region28
      $region27: #{gated_conv_forward.1} parent=23 // pred_region
        %s131 = smul.u32 128, %s9
        %p132 = scmp.lt.s32.totalorder %s131, 511
        %s133 = scalar_select %p132, %s131, 511
        %s134 = smul.addr %s133, 4
        %s135 = scalar_lea.vmem %s0, %s134
        %s136 = smul.u32 128, %s9
      $region28: #{gated_conv_forward.1} parent=23 // pred_fallthru
        _
    $region24: #{gated_conv_forward.1} parent=5 // pred_fallthru
      _
    %p137 = scmp.le.s32.totalorder 1, %s9
    %p138 = scmp.lt.s32.totalorder %s9, 5
    %p139 = pnand %p137, %p138
    %p140 = pneg %p139
    // Predicated region
    $region29: #{gated_conv_forward.1} parent=5 // pred_check
      _
    $region30: #{gated_conv_forward.1} parent=5 // pred_check_branch
      %142 = sbr.rel (%p139) target = $region32
    $region31: #{gated_conv_forward.1} parent=5 // pred_region
      %s143 = ssub.s32 %s9, 1
      %s144 = smul.u32 128, %s14
      %p145 = scmp.lt.s32.totalorder %s144, 511
      %s146 = scalar_select %p145, %s144, 511
      %s147 = smul.addr %s146, 4
      %s148 = scalar_lea.vmem %s0, %s147
      %p149 = pneg %p35
      %p150 = pneg %p32
      %p151 = pneg %p56
      %p152 = pneg %p53
      %p153 = pneg %p77
      %p154 = pneg %p74
      %p155 = pneg %p103
      %p156 = pneg %p100
      %s157 = smul.u32 128, %s14
      %p158 = scmp.lt.s32.totalorder %s157, 511
      %s159 = scalar_select %p158, %s157, 511
      %s160 = smul.addr %s159, 4
      %s161 = scalar_lea.vmem %s3, %s160
      %s162 = smul.u32 128, %s14
      %p163 = scmp.lt.s32.totalorder %s162, 511
      %s164 = scalar_select %p163, %s162, 511
      %s165 = smul.addr %s164, 4
      %s166 = scalar_lea.vmem %s0, %s165
      %s167 = smul.u32 128, %s14
      %s168 = smul.u32 128, %s14
      %p169 = scmp.lt.s32.totalorder %s168, 511
      %s170 = scalar_select %p169, %s168, 511
      %s171 = smul.addr %s170, 4
      %s172 = scalar_lea.vmem %s3, %s171
      %s173 = smul.u32 128, %s14
      %v175 = vld [vmem:[%s166] sm:$0xf]
      %v176 = vld [vmem:[%s166 + $0x4] sm:$0xf]
      %v177 = vld [vmem:[%s166 + $0x8] sm:$0xf]
      %v178 = vld [vmem:[%s166 + $0xc] sm:$0xf]
      %v179 = vld [vmem:[%s166 + $0x10] sm:$0xf]
      %v180 = vld [vmem:[%s166 + $0x14] sm:$0xf]
      %v181 = vld [vmem:[%s166 + $0x18] sm:$0xf]
      %v182 = vld [vmem:[%s166 + $0x1c] sm:$0xf]
      %v183 = vld [vmem:[%s166 + $0x20] sm:$0xf]
      %v184 = vld [vmem:[%s166 + $0x24] sm:$0xf]
      %v185 = vld [vmem:[%s166 + $0x28] sm:$0xf]
      %v186 = vld [vmem:[%s166 + $0x2c] sm:$0xf]
      %v187 = vld [vmem:[%s166 + $0x30] sm:$0xf]
      %v188 = vld [vmem:[%s166 + $0x34] sm:$0xf]
      %v189 = vld [vmem:[%s166 + $0x38] sm:$0xf]
      %v190 = vld [vmem:[%s166 + $0x3c] sm:$0xf]
      %v191 = vld [vmem:[%s166 + $0x40] sm:$0xf]
      %v192 = vld [vmem:[%s166 + $0x44] sm:$0xf]
      %v193 = vld [vmem:[%s166 + $0x48] sm:$0xf]
      %v194 = vld [vmem:[%s166 + $0x4c] sm:$0xf]
      %v195 = vld [vmem:[%s166 + $0x50] sm:$0xf]
      %v196 = vld [vmem:[%s166 + $0x54] sm:$0xf]
      %v197 = vld [vmem:[%s166 + $0x58] sm:$0xf]
      %v198 = vld [vmem:[%s166 + $0x5c] sm:$0xf]
      %v199 = vld [vmem:[%s166 + $0x60] sm:$0xf]
      %v200 = vld [vmem:[%s166 + $0x64] sm:$0xf]
      %v201 = vld [vmem:[%s166 + $0x68] sm:$0xf]
      %v202 = vld [vmem:[%s166 + $0x6c] sm:$0xf]
      %v203 = vld [vmem:[%s166 + $0x70] sm:$0xf]
      %v204 = vld [vmem:[%s166 + $0x74] sm:$0xf]
      %v205 = vld [vmem:[%s166 + $0x78] sm:$0xf]
      %v206 = vld [vmem:[%s166 + $0x7c] sm:$0xf]
      %v207 = vld [vmem:[%s166 + $0x80] sm:$0xf]
      %v208 = vld [vmem:[%s166 + $0x84] sm:$0xf]
      %v209 = vld [vmem:[%s166 + $0x88] sm:$0xf]
      %v210 = vld [vmem:[%s166 + $0x8c] sm:$0xf]
      %v211 = vld [vmem:[%s166 + $0x90] sm:$0xf]
      %v212 = vld [vmem:[%s166 + $0x94] sm:$0xf]
      %v213 = vld [vmem:[%s166 + $0x98] sm:$0xf]
      %v214 = vld [vmem:[%s166 + $0x9c] sm:$0xf]
      %v215 = vld [vmem:[%s166 + $0xa0] sm:$0xf]
      %v216 = vld [vmem:[%s166 + $0xa4] sm:$0xf]
      %v217 = vld [vmem:[%s166 + $0xa8] sm:$0xf]
      %v218 = vld [vmem:[%s166 + $0xac] sm:$0xf]
      %v219 = vld [vmem:[%s166 + $0xb0] sm:$0xf]
      %v220 = vld [vmem:[%s166 + $0xb4] sm:$0xf]
      %v221 = vld [vmem:[%s166 + $0xb8] sm:$0xf]
      %v222 = vld [vmem:[%s166 + $0xbc] sm:$0xf]
      %v223 = vld [vmem:[%s166 + $0xc0] sm:$0xf]
      %v224 = vld [vmem:[%s166 + $0xc4] sm:$0xf]
      %v225 = vld [vmem:[%s166 + $0xc8] sm:$0xf]
      %v226 = vld [vmem:[%s166 + $0xcc] sm:$0xf]
      %v227 = vld [vmem:[%s166 + $0xd0] sm:$0xf]
      %v228 = vld [vmem:[%s166 + $0xd4] sm:$0xf]
      %v229 = vld [vmem:[%s166 + $0xd8] sm:$0xf]
      %v230 = vld [vmem:[%s166 + $0xdc] sm:$0xf]
      %v231 = vld [vmem:[%s166 + $0xe0] sm:$0xf]
      %v232 = vld [vmem:[%s166 + $0xe4] sm:$0xf]
      %v233 = vld [vmem:[%s166 + $0xe8] sm:$0xf]
      %v234 = vld [vmem:[%s166 + $0xec] sm:$0xf]
      %v235 = vld [vmem:[%s166 + $0xf0] sm:$0xf]
      %v236 = vld [vmem:[%s166 + $0xf4] sm:$0xf]
      %v237 = vld [vmem:[%s166 + $0xf8] sm:$0xf]
      %v238 = vld [vmem:[%s166 + $0xfc] sm:$0xf]
      %v239 = vld [vmem:[%s166 + $0x100] sm:$0xf]
      %v240 = vld [vmem:[%s166 + $0x104] sm:$0xf]
      %v241 = vld [vmem:[%s166 + $0x108] sm:$0xf]
      %v242 = vld [vmem:[%s166 + $0x10c] sm:$0xf]
      %v243 = vld [vmem:[%s166 + $0x110] sm:$0xf]
      %v244 = vld [vmem:[%s166 + $0x114] sm:$0xf]
      %v245 = vld [vmem:[%s166 + $0x118] sm:$0xf]
      %v246 = vld [vmem:[%s166 + $0x11c] sm:$0xf]
      %v247 = vld [vmem:[%s166 + $0x120] sm:$0xf]
      %v248 = vld [vmem:[%s166 + $0x124] sm:$0xf]
      %v249 = vld [vmem:[%s166 + $0x128] sm:$0xf]
      %v250 = vld [vmem:[%s166 + $0x12c] sm:$0xf]
      %v251 = vld [vmem:[%s166 + $0x130] sm:$0xf]
      %v252 = vld [vmem:[%s166 + $0x134] sm:$0xf]
      %v253 = vld [vmem:[%s166 + $0x138] sm:$0xf]
      %v254 = vld [vmem:[%s166 + $0x13c] sm:$0xf]
      %v255 = vld [vmem:[%s166 + $0x140] sm:$0xf]
      %v256 = vld [vmem:[%s166 + $0x144] sm:$0xf]
      %v257 = vld [vmem:[%s166 + $0x148] sm:$0xf]
      %v258 = vld [vmem:[%s166 + $0x14c] sm:$0xf]
      %v259 = vld [vmem:[%s166 + $0x150] sm:$0xf]
      %v260 = vld [vmem:[%s166 + $0x154] sm:$0xf]
      %v261 = vld [vmem:[%s166 + $0x158] sm:$0xf]
      %v262 = vld [vmem:[%s166 + $0x15c] sm:$0xf]
      %v263 = vld [vmem:[%s166 + $0x160] sm:$0xf]
      %v264 = vld [vmem:[%s166 + $0x164] sm:$0xf]
      %v265 = vld [vmem:[%s166 + $0x168] sm:$0xf]
      %v266 = vld [vmem:[%s166 + $0x16c] sm:$0xf]
      %v267 = vld [vmem:[%s166 + $0x170] sm:$0xf]
      %v268 = vld [vmem:[%s166 + $0x174] sm:$0xf]
      %v269 = vld [vmem:[%s166 + $0x178] sm:$0xf]
      %v270 = vld [vmem:[%s166 + $0x17c] sm:$0xf]
      %v271 = vld [vmem:[%s166 + $0x180] sm:$0xf]
      %v272 = vld [vmem:[%s166 + $0x184] sm:$0xf]
      %v273 = vld [vmem:[%s166 + $0x188] sm:$0xf]
      %v274 = vld [vmem:[%s166 + $0x18c] sm:$0xf]
      %v275 = vld [vmem:[%s166 + $0x190] sm:$0xf]
      %v276 = vld [vmem:[%s166 + $0x194] sm:$0xf]
      %v277 = vld [vmem:[%s166 + $0x198] sm:$0xf]
      %v278 = vld [vmem:[%s166 + $0x19c] sm:$0xf]
      %v279 = vld [vmem:[%s166 + $0x1a0] sm:$0xf]
      %v280 = vld [vmem:[%s166 + $0x1a4] sm:$0xf]
      %v281 = vld [vmem:[%s166 + $0x1a8] sm:$0xf]
      %v282 = vld [vmem:[%s166 + $0x1ac] sm:$0xf]
      %v283 = vld [vmem:[%s166 + $0x1b0] sm:$0xf]
      %v284 = vld [vmem:[%s166 + $0x1b4] sm:$0xf]
      %v285 = vld [vmem:[%s166 + $0x1b8] sm:$0xf]
      %v286 = vld [vmem:[%s166 + $0x1bc] sm:$0xf]
      %v287 = vld [vmem:[%s166 + $0x1c0] sm:$0xf]
      %v288 = vld [vmem:[%s166 + $0x1c4] sm:$0xf]
      %v289 = vld [vmem:[%s166 + $0x1c8] sm:$0xf]
      %v290 = vld [vmem:[%s166 + $0x1cc] sm:$0xf]
      %v291 = vld [vmem:[%s166 + $0x1d0] sm:$0xf]
      %v292 = vld [vmem:[%s166 + $0x1d4] sm:$0xf]
      %v293 = vld [vmem:[%s166 + $0x1d8] sm:$0xf]
      %v294 = vld [vmem:[%s166 + $0x1dc] sm:$0xf]
      %v295 = vld [vmem:[%s166 + $0x1e0] sm:$0xf]
      %v296 = vld [vmem:[%s166 + $0x1e4] sm:$0xf]
      %v297 = vld [vmem:[%s166 + $0x1e8] sm:$0xf]
      %v298 = vld [vmem:[%s166 + $0x1ec] sm:$0xf]
      %v299 = vld [vmem:[%s166 + $0x1f0] sm:$0xf]
      %v300 = vld [vmem:[%s166 + $0x1f4] sm:$0xf]
      %v301 = vld [vmem:[%s166 + $0x1f8] sm:$0xf]
      %v302 = vld [vmem:[%s166 + $0x1fc] sm:$0xf]
      %v303 = vld [vmem:[%s1] sm:$0xf]
      %v304 = vld [vmem:[%s1 + $0x4] sm:$0xf]
      %v305 = vld [vmem:[%s1 + $0x8] sm:$0xf]
      %v306 = vld [vmem:[%s1 + $0xc] sm:$0xf]
      %v307 = vld [vmem:[%s1 + $0x10] sm:$0xf]
      %v308 = vld [vmem:[%s1 + $0x14] sm:$0xf]
      %v309 = vld [vmem:[%s1 + $0x18] sm:$0xf]
      %v310 = vld [vmem:[%s1 + $0x1c] sm:$0xf]
      %v311 = vld [vmem:[%s1 + $0x20] sm:$0xf]
      %v312 = vld [vmem:[%s1 + $0x24] sm:$0xf]
      %v313 = vld [vmem:[%s1 + $0x28] sm:$0xf]
      %v314 = vld [vmem:[%s1 + $0x2c] sm:$0xf]
      %v315 = vld [vmem:[%s1 + $0x30] sm:$0xf]
      %v316 = vld [vmem:[%s1 + $0x34] sm:$0xf]
      %v317 = vld [vmem:[%s1 + $0x38] sm:$0xf]
      %v318 = vld [vmem:[%s1 + $0x3c] sm:$0xf]
      %v319 = vld [vmem:[%s2] sm:$0x1]
      %v321 = vlaneseq
      %v322 = vshrl.u32 %v321, 7
      %v323 = vsub.s32 0, %v322
      %v324 = vrot.slane %v319, %v323
      %v454 = vunpack.c.l.b16 %v175
      %v455 = vunpack.c.l.b16 %v176
      %v456 = vunpack.c.l.b16 %v177
      %v457 = vunpack.c.l.b16 %v178
      %v458 = vunpack.c.l.b16 %v179
      %v459 = vunpack.c.l.b16 %v180
      %v460 = vunpack.c.l.b16 %v181
      %v461 = vunpack.c.l.b16 %v182
      %v462 = vunpack.c.l.b16 %v183
      %v463 = vunpack.c.l.b16 %v184
      %v464 = vunpack.c.l.b16 %v185
      %v465 = vunpack.c.l.b16 %v186
      %v466 = vunpack.c.l.b16 %v187
      %v467 = vunpack.c.l.b16 %v188
      %v468 = vunpack.c.l.b16 %v189
      %v469 = vunpack.c.l.b16 %v190
      %v470 = vunpack.c.l.b16 %v191
      %v471 = vunpack.c.l.b16 %v192
      %v472 = vunpack.c.l.b16 %v193
      %v473 = vunpack.c.l.b16 %v194
      %v474 = vunpack.c.l.b16 %v195
      %v475 = vunpack.c.l.b16 %v196
      %v476 = vunpack.c.l.b16 %v197
      %v477 = vunpack.c.l.b16 %v198
      %v478 = vunpack.c.l.b16 %v199
      %v479 = vunpack.c.l.b16 %v200
      %v480 = vunpack.c.l.b16 %v201
      %v481 = vunpack.c.l.b16 %v202
      %v482 = vunpack.c.l.b16 %v203
      %v483 = vunpack.c.l.b16 %v204
      %v484 = vunpack.c.l.b16 %v205
      %v485 = vunpack.c.l.b16 %v206
      %v486 = vunpack.c.l.b16 %v207
      %v487 = vunpack.c.l.b16 %v208
      %v488 = vunpack.c.l.b16 %v209
      %v489 = vunpack.c.l.b16 %v210
      %v490 = vunpack.c.l.b16 %v211
      %v491 = vunpack.c.l.b16 %v212
      %v492 = vunpack.c.l.b16 %v213
      %v493 = vunpack.c.l.b16 %v214
      %v494 = vunpack.c.l.b16 %v215
      %v495 = vunpack.c.l.b16 %v216
      %v496 = vunpack.c.l.b16 %v217
      %v497 = vunpack.c.l.b16 %v218
      %v498 = vunpack.c.l.b16 %v219
      %v499 = vunpack.c.l.b16 %v220
      %v500 = vunpack.c.l.b16 %v221
      %v501 = vunpack.c.l.b16 %v222
      %v502 = vunpack.c.l.b16 %v223
      %v503 = vunpack.c.l.b16 %v224
      %v504 = vunpack.c.l.b16 %v225
      %v505 = vunpack.c.l.b16 %v226
      %v506 = vunpack.c.l.b16 %v227
      %v507 = vunpack.c.l.b16 %v228
      %v508 = vunpack.c.l.b16 %v229
      %v509 = vunpack.c.l.b16 %v230
      %v510 = vunpack.c.l.b16 %v231
      %v511 = vunpack.c.l.b16 %v232
      %v512 = vunpack.c.l.b16 %v233
      %v513 = vunpack.c.l.b16 %v234
      %v514 = vunpack.c.l.b16 %v235
      %v515 = vunpack.c.l.b16 %v236
      %v516 = vunpack.c.l.b16 %v237
      %v517 = vunpack.c.l.b16 %v238
      %v518 = vunpack.c.l.b16 %v239
      %v519 = vunpack.c.l.b16 %v240
      %v520 = vunpack.c.l.b16 %v241
      %v521 = vunpack.c.l.b16 %v242
      %v522 = vunpack.c.l.b16 %v243
      %v523 = vunpack.c.l.b16 %v244
      %v524 = vunpack.c.l.b16 %v245
      %v525 = vunpack.c.l.b16 %v246
      %v526 = vunpack.c.l.b16 %v247
      %v527 = vunpack.c.l.b16 %v248
      %v528 = vunpack.c.l.b16 %v249
      %v529 = vunpack.c.l.b16 %v250
      %v530 = vunpack.c.l.b16 %v251
      %v531 = vunpack.c.l.b16 %v252
      %v532 = vunpack.c.l.b16 %v253
      %v533 = vunpack.c.l.b16 %v254
      %v534 = vunpack.c.l.b16 %v255
      %v535 = vunpack.c.l.b16 %v256
      %v536 = vunpack.c.l.b16 %v257
      %v537 = vunpack.c.l.b16 %v258
      %v538 = vunpack.c.l.b16 %v259
      %v539 = vunpack.c.l.b16 %v260
      %v540 = vunpack.c.l.b16 %v261
      %v541 = vunpack.c.l.b16 %v262
      %v542 = vunpack.c.l.b16 %v263
      %v543 = vunpack.c.l.b16 %v264
      %v544 = vunpack.c.l.b16 %v265
      %v545 = vunpack.c.l.b16 %v266
      %v546 = vunpack.c.l.b16 %v267
      %v547 = vunpack.c.l.b16 %v268
      %v548 = vunpack.c.l.b16 %v269
      %v549 = vunpack.c.l.b16 %v270
      %v550 = vunpack.c.l.b16 %v271
      %v551 = vunpack.c.l.b16 %v272
      %v552 = vunpack.c.l.b16 %v273
      %v553 = vunpack.c.l.b16 %v274
      %v554 = vunpack.c.l.b16 %v275
      %v555 = vunpack.c.l.b16 %v276
      %v556 = vunpack.c.l.b16 %v277
      %v557 = vunpack.c.l.b16 %v278
      %v558 = vunpack.c.l.b16 %v279
      %v559 = vunpack.c.l.b16 %v280
      %v560 = vunpack.c.l.b16 %v281
      %v561 = vunpack.c.l.b16 %v282
      %v562 = vunpack.c.l.b16 %v283
      %v563 = vunpack.c.l.b16 %v284
      %v564 = vunpack.c.l.b16 %v285
      %v565 = vunpack.c.l.b16 %v286
      %v566 = vunpack.c.l.b16 %v287
      %v567 = vunpack.c.l.b16 %v288
      %v568 = vunpack.c.l.b16 %v289
      %v569 = vunpack.c.l.b16 %v290
      %v570 = vunpack.c.l.b16 %v291
      %v571 = vunpack.c.l.b16 %v292
      %v572 = vunpack.c.l.b16 %v293
      %v573 = vunpack.c.l.b16 %v294
      %v574 = vunpack.c.l.b16 %v295
      %v575 = vunpack.c.l.b16 %v296
      %v576 = vunpack.c.l.b16 %v297
      %v577 = vunpack.c.l.b16 %v298
      %v578 = vunpack.c.l.b16 %v299
      %v579 = vunpack.c.l.b16 %v300
      %v580 = vunpack.c.l.b16 %v301
      %v581 = vunpack.c.l.b16 %v302
      %v582 = vpack.c.b16 %v455, %v454
      %v583 = vpack.c.b16 %v457, %v456
      %v584 = vpack.c.b16 %v459, %v458
      %v585 = vpack.c.b16 %v461, %v460
      %v586 = vpack.c.b16 %v463, %v462
      %v587 = vpack.c.b16 %v465, %v464
      %v588 = vpack.c.b16 %v467, %v466
      %v589 = vpack.c.b16 %v469, %v468
      %v590 = vpack.c.b16 %v471, %v470
      %v591 = vpack.c.b16 %v473, %v472
      %v592 = vpack.c.b16 %v475, %v474
      %v593 = vpack.c.b16 %v477, %v476
      %v594 = vpack.c.b16 %v479, %v478
      %v595 = vpack.c.b16 %v481, %v480
      %v596 = vpack.c.b16 %v483, %v482
      %v597 = vpack.c.b16 %v485, %v484
      %v598 = vpack.c.b16 %v487, %v486
      %v599 = vpack.c.b16 %v489, %v488
      %v600 = vpack.c.b16 %v491, %v490
      %v601 = vpack.c.b16 %v493, %v492
      %v602 = vpack.c.b16 %v495, %v494
      %v603 = vpack.c.b16 %v497, %v496
      %v604 = vpack.c.b16 %v499, %v498
      %v605 = vpack.c.b16 %v501, %v500
      %v606 = vpack.c.b16 %v503, %v502
      %v607 = vpack.c.b16 %v505, %v504
      %v608 = vpack.c.b16 %v507, %v506
      %v609 = vpack.c.b16 %v509, %v508
      %v610 = vpack.c.b16 %v511, %v510
      %v611 = vpack.c.b16 %v513, %v512
      %v612 = vpack.c.b16 %v515, %v514
      %v613 = vpack.c.b16 %v517, %v516
      %v614 = vpack.c.b16 %v519, %v518
      %v615 = vpack.c.b16 %v521, %v520
      %v616 = vpack.c.b16 %v523, %v522
      %v617 = vpack.c.b16 %v525, %v524
      %v618 = vpack.c.b16 %v527, %v526
      %v619 = vpack.c.b16 %v529, %v528
      %v620 = vpack.c.b16 %v531, %v530
      %v621 = vpack.c.b16 %v533, %v532
      %v622 = vpack.c.b16 %v535, %v534
      %v623 = vpack.c.b16 %v537, %v536
      %v624 = vpack.c.b16 %v539, %v538
      %v625 = vpack.c.b16 %v541, %v540
      %v626 = vpack.c.b16 %v543, %v542
      %v627 = vpack.c.b16 %v545, %v544
      %v628 = vpack.c.b16 %v547, %v546
      %v629 = vpack.c.b16 %v549, %v548
      %v630 = vpack.c.b16 %v551, %v550
      %v631 = vpack.c.b16 %v553, %v552
      %v632 = vpack.c.b16 %v555, %v554
      %v633 = vpack.c.b16 %v557, %v556
      %v634 = vpack.c.b16 %v559, %v558
      %v635 = vpack.c.b16 %v561, %v560
      %v636 = vpack.c.b16 %v563, %v562
      %v637 = vpack.c.b16 %v565, %v564
      %v638 = vpack.c.b16 %v567, %v566
      %v639 = vpack.c.b16 %v569, %v568
      %v640 = vpack.c.b16 %v571, %v570
      %v641 = vpack.c.b16 %v573, %v572
      %v642 = vpack.c.b16 %v575, %v574
      %v643 = vpack.c.b16 %v577, %v576
      %v644 = vpack.c.b16 %v579, %v578
      %v645 = vpack.c.b16 %v581, %v580
      %v726 = vunpack.c.l.b16 %v303
      %v727 = vunpack.c.l.b16 %v304
      %v728 = vunpack.c.l.b16 %v305
      %v729 = vunpack.c.l.b16 %v306
      %v730 = vunpack.c.l.b16 %v307
      %v731 = vunpack.c.l.b16 %v308
      %v732 = vunpack.c.l.b16 %v309
      %v733 = vunpack.c.l.b16 %v310
      %v734 = vunpack.c.l.b16 %v311
      %v735 = vunpack.c.l.b16 %v312
      %v736 = vunpack.c.l.b16 %v313
      %v737 = vunpack.c.l.b16 %v314
      %v738 = vunpack.c.l.b16 %v315
      %v739 = vunpack.c.l.b16 %v316
      %v740 = vunpack.c.l.b16 %v317
      %v741 = vunpack.c.l.b16 %v318
      %v742 = vpack.c.b16 %v727, %v726
      %v743 = vpack.c.b16 %v729, %v728
      %v744 = vpack.c.b16 %v731, %v730
      %v745 = vpack.c.b16 %v733, %v732
      %v746 = vpack.c.b16 %v735, %v734
      %v747 = vpack.c.b16 %v737, %v736
      %v748 = vpack.c.b16 %v739, %v738
      %v749 = vpack.c.b16 %v741, %v740
      %758 = vmatprep.subr.bf16.mxu0 0
      %759 = vmatpush1.bf16.msra.mxu0 %v742
      %760 = vmatprep.subr.bf16.mxu0 0
      %761 = vmatpush1.bf16.msra.mxu0 %v743
      %762 = vmatprep.subr.bf16.mxu0 0
      %763 = vmatpush1.bf16.msra.mxu0 %v744
      %764 = vmatprep.subr.bf16.mxu0 0
      %765 = vmatpush1.bf16.msra.mxu0 %v745
      %766 = vmatprep.subr.bf16.mxu0 0
      %767 = vmatpush1.bf16.msra.mxu0 %v746
      %768 = vmatprep.subr.bf16.mxu0 0
      %769 = vmatpush1.bf16.msra.mxu0 %v747
      %770 = vmatprep.subr.bf16.mxu0 0
      %771 = vmatpush1.bf16.msra.mxu0 %v748
      %772 = vmatprep.subr.bf16.mxu0 0
      %773 = vmatpush1.bf16.msra.mxu0 %v749
      %774 = vmatprep.subr.bf16.mxu0 0
      %775 = vmatpush1.bf16.msra.mxu0 0
      %776 = vmatprep.subr.bf16.mxu0 0
      %777 = vmatpush1.bf16.msra.mxu0 0
      %778 = vmatprep.subr.bf16.mxu0 0
      %779 = vmatpush1.bf16.msra.mxu0 0
      %780 = vmatprep.subr.bf16.mxu0 0
      %781 = vmatpush1.bf16.msra.mxu0 0
      %782 = vmatprep.subr.bf16.mxu0 0
      %783 = vmatpush1.bf16.msra.mxu0 0
      %784 = vmatprep.subr.bf16.mxu0 0
      %785 = vmatpush1.bf16.msra.mxu0 0
      %786 = vmatprep.subr.bf16.mxu0 0
      %787 = vmatpush1.bf16.msra.mxu0 0
      %788 = vmatprep.subr.bf16.mxu0 0
      %789 = vmatpush1.bf16.msra.mxu0 0
      %790 = vmatprep.mubr.bf16.mxu0 0
      %791 = vmatmul.mubr.bf16.gmra.mrb[0].mxu0 %v582
      %v792 = vpop.f32.mrb[0].mxu0
      %v793 = vadd.f32 %v324, %v792
      %v794 = vpop.f32.mrb[0].mxu0
      %v795 = vpop.f32.mrb[0].mxu0
      %v796 = vadd.f32 %v324, %v795
      %v797 = vpop.f32.mrb[0].mxu0
      %798 = vmatprep.mubr.bf16.mxu0 0
      %799 = vmatmul.mubr.bf16.gmra.mrb[0].mxu0 %v583
      %v800 = vpop.f32.mrb[0].mxu0
      %v801 = vadd.f32 %v324, %v800
      %v802 = vpop.f32.mrb[0].mxu0
      %v803 = vpop.f32.mrb[0].mxu0
      %v804 = vadd.f32 %v324, %v803
      %v805 = vpop.f32.mrb[0].mxu0
      %806 = vmatprep.mubr.bf16.mxu0 0
      %807 = vmatmul.mubr.bf16.gmra.mrb[0].mxu0 %v584
      %v808 = vpop.f32.mrb[0].mxu0
      %v809 = vadd.f32 %v324, %v808
      %v810 = vpop.f32.mrb[0].mxu0
      %v811 = vpop.f32.mrb[0].mxu0
      %v812 = vadd.f32 %v324, %v811
      %v813 = vpop.f32.mrb[0].mxu0
      %814 = vmatprep.mubr.bf16.mxu0 0
      %815 = vmatmul.mubr.bf16.gmra.mrb[0].mxu0 %v585
      %v816 = vpop.f32.mrb[0].mxu0
      %v817 = vadd.f32 %v324, %v816
      %v818 = vpop.f32.mrb[0].mxu0
      %v819 = vpop.f32.mrb[0].mxu0
      %v820 = vadd.f32 %v324, %v819
      %v821 = vpop.f32.mrb[0].mxu0
      %822 = vmatprep.mubr.bf16.mxu0 0
      %823 = vmatmul.mubr.bf16.gmra.mrb[0].mxu0 %v586
      %v824 = vpop.f32.mrb[0].mxu0
      %v825 = vadd.f32 %v324, %v824
      %v826 = vpop.f32.mrb[0].mxu0
      %v827 = vpop.f32.mrb[0].mxu0
      %v828 = vadd.f32 %v324, %v827
      %v829 = vpop.f32.mrb[0].mxu0
      %830 = vmatprep.mubr.bf16.mxu0 0
      %831 = vmatmul.mubr.bf16.gmra.mrb[0].mxu0 %v587
      %v832 = vpop.f32.mrb[0].mxu0
      %v833 = vadd.f32 %v324, %v832
      %v834 = vpop.f32.mrb[0].mxu0
      %v835 = vpop.f32.mrb[0].mxu0
      %v836 = vadd.f32 %v324, %v835
      %v837 = vpop.f32.mrb[0].mxu0
      %838 = vmatprep.mubr.bf16.mxu0 0
      %839 = vmatmul.mubr.bf16.gmra.mrb[0].mxu0 %v588
      %v840 = vpop.f32.mrb[0].mxu0
      %v841 = vadd.f32 %v324, %v840
      %v842 = vpop.f32.mrb[0].mxu0
      %v843 = vpop.f32.mrb[0].mxu0
      %v844 = vadd.f32 %v324, %v843
      %v845 = vpop.f32.mrb[0].mxu0
      %846 = vmatprep.mubr.bf16.mxu0 0
      %847 = vmatmul.mubr.bf16.gmra.mrb[0].mxu0 %v589
      %v848 = vpop.f32.mrb[0].mxu0
      %v849 = vadd.f32 %v324, %v848
      %v850 = vpop.f32.mrb[0].mxu0
      %v851 = vpop.f32.mrb[0].mxu0
      %v852 = vadd.f32 %v324, %v851
      %v853 = vpop.f32.mrb[0].mxu0
      %854 = vmatprep.mubr.bf16.mxu0 0
      %855 = vmatmul.mubr.bf16.gmra.mrb[0].mxu0 %v590
      %v856 = vpop.f32.mrb[0].mxu0
      %v857 = vadd.f32 %v324, %v856
      %v858 = vpop.f32.mrb[0].mxu0
      %v859 = vpop.f32.mrb[0].mxu0
      %v860 = vadd.f32 %v324, %v859
      %v861 = vpop.f32.mrb[0].mxu0
      %862 = vmatprep.mubr.bf16.mxu0 0
      %863 = vmatmul.mubr.bf16.gmra.mrb[0].mxu0 %v591
      %v864 = vpop.f32.mrb[0].mxu0
      %v865 = vadd.f32 %v324, %v864
      %v866 = vpop.f32.mrb[0].mxu0
      %v867 = vpop.f32.mrb[0].mxu0
      %v868 = vadd.f32 %v324, %v867
      %v869 = vpop.f32.mrb[0].mxu0
      %870 = vmatprep.mubr.bf16.mxu0 0
      %871 = vmatmul.mubr.bf16.gmra.mrb[0].mxu0 %v592
      %v872 = vpop.f32.mrb[0].mxu0
      %v873 = vadd.f32 %v324, %v872
      %v874 = vpop.f32.mrb[0].mxu0
      %v875 = vpop.f32.mrb[0].mxu0
      %v876 = vadd.f32 %v324, %v875
      %v877 = vpop.f32.mrb[0].mxu0
      %878 = vmatprep.mubr.bf16.mxu0 0
      %879 = vmatmul.mubr.bf16.gmra.mrb[0].mxu0 %v593
      %v880 = vpop.f32.mrb[0].mxu0
      %v881 = vadd.f32 %v324, %v880
      %v882 = vpop.f32.mrb[0].mxu0
      %v883 = vpop.f32.mrb[0].mxu0
      %v884 = vadd.f32 %v324, %v883
      %v885 = vpop.f32.mrb[0].mxu0
      %886 = vmatprep.mubr.bf16.mxu0 0
      %887 = vmatmul.mubr.bf16.gmra.mrb[0].mxu0 %v594
      %v888 = vpop.f32.mrb[0].mxu0
      %v889 = vadd.f32 %v324, %v888
      %v890 = vpop.f32.mrb[0].mxu0
      %v891 = vpop.f32.mrb[0].mxu0
      %v892 = vadd.f32 %v324, %v891
      %v893 = vpop.f32.mrb[0].mxu0
      %894 = vmatprep.mubr.bf16.mxu0 0
      %895 = vmatmul.mubr.bf16.gmra.mrb[0].mxu0 %v595
      %v896 = vpop.f32.mrb[0].mxu0
      %v897 = vadd.f32 %v324, %v896
      %v898 = vpop.f32.mrb[0].mxu0
      %v899 = vpop.f32.mrb[0].mxu0
      %v900 = vadd.f32 %v324, %v899
      %v901 = vpop.f32.mrb[0].mxu0
      %902 = vmatprep.mubr.bf16.mxu0 0
      %903 = vmatmul.mubr.bf16.gmra.mrb[0].mxu0 %v596
      %v904 = vpop.f32.mrb[0].mxu0
      %v905 = vadd.f32 %v324, %v904
      %v906 = vpop.f32.mrb[0].mxu0
      %v907 = vpop.f32.mrb[0].mxu0
      %v908 = vadd.f32 %v324, %v907
      %v909 = vpop.f32.mrb[0].mxu0
      %910 = vmatprep.mubr.bf16.mxu0 0
      %911 = vmatmul.mubr.bf16.gmra.mrb[0].mxu0 %v597
      %v912 = vpop.f32.mrb[0].mxu0
      %v913 = vadd.f32 %v324, %v912
      %v914 = vpop.f32.mrb[0].mxu0
      %v915 = vpop.f32.mrb[0].mxu0
      %v916 = vadd.f32 %v324, %v915
      %v917 = vpop.f32.mrb[0].mxu0
      %918 = vmatprep.mubr.bf16.mxu0 0
      %919 = vmatmul.mubr.bf16.gmra.mrb[0].mxu0 %v598
      %v920 = vpop.f32.mrb[0].mxu0
      %v921 = vadd.f32 %v324, %v920
      %v922 = vpop.f32.mrb[0].mxu0
      %v923 = vpop.f32.mrb[0].mxu0
      %v924 = vadd.f32 %v324, %v923
      %v925 = vpop.f32.mrb[0].mxu0
      %926 = vmatprep.mubr.bf16.mxu0 0
      %927 = vmatmul.mubr.bf16.gmra.mrb[0].mxu0 %v599
      %v928 = vpop.f32.mrb[0].mxu0
      %v929 = vadd.f32 %v324, %v928
      %v930 = vpop.f32.mrb[0].mxu0
      %v931 = vpop.f32.mrb[0].mxu0
      %v932 = vadd.f32 %v324, %v931
      %v933 = vpop.f32.mrb[0].mxu0
      %934 = vmatprep.mubr.bf16.mxu0 0
      %935 = vmatmul.mubr.bf16.gmra.mrb[0].mxu0 %v600
      %v936 = vpop.f32.mrb[0].mxu0
      %v937 = vadd.f32 %v324, %v936
      %v938 = vpop.f32.mrb[0].mxu0
      %v939 = vpop.f32.mrb[0].mxu0
      %v940 = vadd.f32 %v324, %v939
      %v941 = vpop.f32.mrb[0].mxu0
      %942 = vmatprep.mubr.bf16.mxu0 0
      %943 = vmatmul.mubr.bf16.gmra.mrb[0].mxu0 %v601
      %v944 = vpop.f32.mrb[0].mxu0
      %v945 = vadd.f32 %v324, %v944
      %v946 = vpop.f32.mrb[0].mxu0
      %v947 = vpop.f32.mrb[0].mxu0
      %v948 = vadd.f32 %v324, %v947
      %v949 = vpop.f32.mrb[0].mxu0
      %950 = vmatprep.mubr.bf16.mxu0 0
      %951 = vmatmul.mubr.bf16.gmra.mrb[0].mxu0 %v602
      %v952 = vpop.f32.mrb[0].mxu0
      %v953 = vadd.f32 %v324, %v952
      %v954 = vpop.f32.mrb[0].mxu0
      %v955 = vpop.f32.mrb[0].mxu0
      %v956 = vadd.f32 %v324, %v955
      %v957 = vpop.f32.mrb[0].mxu0
      %958 = vmatprep.mubr.bf16.mxu0 0
      %959 = vmatmul.mubr.bf16.gmra.mrb[0].mxu0 %v603
      %v960 = vpop.f32.mrb[0].mxu0
      %v961 = vadd.f32 %v324, %v960
      %v962 = vpop.f32.mrb[0].mxu0
      %v963 = vpop.f32.mrb[0].mxu0
      %v964 = vadd.f32 %v324, %v963
      %v965 = vpop.f32.mrb[0].mxu0
      %966 = vmatprep.mubr.bf16.mxu0 0
      %967 = vmatmul.mubr.bf16.gmra.mrb[0].mxu0 %v604
      %v968 = vpop.f32.mrb[0].mxu0
      %v969 = vadd.f32 %v324, %v968
      %v970 = vpop.f32.mrb[0].mxu0
      %v971 = vpop.f32.mrb[0].mxu0
      %v972 = vadd.f32 %v324, %v971
      %v973 = vpop.f32.mrb[0].mxu0
      %974 = vmatprep.mubr.bf16.mxu0 0
      %975 = vmatmul.mubr.bf16.gmra.mrb[0].mxu0 %v605
      %v976 = vpop.f32.mrb[0].mxu0
      %v977 = vadd.f32 %v324, %v976
      %v978 = vpop.f32.mrb[0].mxu0
      %v979 = vpop.f32.mrb[0].mxu0
      %v980 = vadd.f32 %v324, %v979
      %v981 = vpop.f32.mrb[0].mxu0
      %982 = vmatprep.mubr.bf16.mxu0 0
      %983 = vmatmul.mubr.bf16.gmra.mrb[0].mxu0 %v606
      %v984 = vpop.f32.mrb[0].mxu0
      %v985 = vadd.f32 %v324, %v984
      %v986 = vpop.f32.mrb[0].mxu0
      %v987 = vpop.f32.mrb[0].mxu0
      %v988 = vadd.f32 %v324, %v987
      %v989 = vpop.f32.mrb[0].mxu0
      %990 = vmatprep.mubr.bf16.mxu0 0
      %991 = vmatmul.mubr.bf16.gmra.mrb[0].mxu0 %v607
      %v992 = vpop.f32.mrb[0].mxu0
      %v993 = vadd.f32 %v324, %v992
      %v994 = vpop.f32.mrb[0].mxu0
      %v995 = vpop.f32.mrb[0].mxu0
      %v996 = vadd.f32 %v324, %v995
      %v997 = vpop.f32.mrb[0].mxu0
      %998 = vmatprep.mubr.bf16.mxu0 0
      %999 = vmatmul.mubr.bf16.gmra.mrb[0].mxu0 %v608
      %v1000 = vpop.f32.mrb[0].mxu0
      %v1001 = vadd.f32 %v324, %v1000
      %v1002 = vpop.f32.mrb[0].mxu0
      %v1003 = vpop.f32.mrb[0].mxu0
      %v1004 = vadd.f32 %v324, %v1003
      %v1005 = vpop.f32.mrb[0].mxu0
      %1006 = vmatprep.mubr.bf16.mxu0 0
      %1007 = vmatmul.mubr.bf16.gmra.mrb[0].mxu0 %v609
      %v1008 = vpop.f32.mrb[0].mxu0
      %v1009 = vadd.f32 %v324, %v1008
      %v1010 = vpop.f32.mrb[0].mxu0
      %v1011 = vpop.f32.mrb[0].mxu0
      %v1012 = vadd.f32 %v324, %v1011
      %v1013 = vpop.f32.mrb[0].mxu0
      %1014 = vmatprep.mubr.bf16.mxu0 0
      %1015 = vmatmul.mubr.bf16.gmra.mrb[0].mxu0 %v610
      %v1016 = vpop.f32.mrb[0].mxu0
      %v1017 = vadd.f32 %v324, %v1016
      %v1018 = vpop.f32.mrb[0].mxu0
      %v1019 = vpop.f32.mrb[0].mxu0
      %v1020 = vadd.f32 %v324, %v1019
      %v1021 = vpop.f32.mrb[0].mxu0
      %1022 = vmatprep.mubr.bf16.mxu0 0
      %1023 = vmatmul.mubr.bf16.gmra.mrb[0].mxu0 %v611
      %v1024 = vpop.f32.mrb[0].mxu0
      %v1025 = vadd.f32 %v324, %v1024
      %v1026 = vpop.f32.mrb[0].mxu0
      %v1027 = vpop.f32.mrb[0].mxu0
      %v1028 = vadd.f32 %v324, %v1027
      %v1029 = vpop.f32.mrb[0].mxu0
      %1030 = vmatprep.mubr.bf16.mxu0 0
      %1031 = vmatmul.mubr.bf16.gmra.mrb[0].mxu0 %v612
      %v1032 = vpop.f32.mrb[0].mxu0
      %v1033 = vadd.f32 %v324, %v1032
      %v1034 = vpop.f32.mrb[0].mxu0
      %v1035 = vpop.f32.mrb[0].mxu0
      %v1036 = vadd.f32 %v324, %v1035
      %v1037 = vpop.f32.mrb[0].mxu0
      %1038 = vmatprep.mubr.bf16.mxu0 0
      %1039 = vmatmul.mubr.bf16.gmra.mrb[0].mxu0 %v613
      %v1040 = vpop.f32.mrb[0].mxu0
      %v1041 = vadd.f32 %v324, %v1040
      %v1042 = vpop.f32.mrb[0].mxu0
      %v1043 = vpop.f32.mrb[0].mxu0
      %v1044 = vadd.f32 %v324, %v1043
      %v1045 = vpop.f32.mrb[0].mxu0
      %1046 = vmatprep.mubr.bf16.mxu0 0
      %1047 = vmatmul.mubr.bf16.gmra.mrb[0].mxu0 %v614
      %v1048 = vpop.f32.mrb[0].mxu0
      %v1049 = vadd.f32 %v324, %v1048
      %v1050 = vpop.f32.mrb[0].mxu0
      %v1051 = vpop.f32.mrb[0].mxu0
      %v1052 = vadd.f32 %v324, %v1051
      %v1053 = vpop.f32.mrb[0].mxu0
      %1054 = vmatprep.mubr.bf16.mxu0 0
      %1055 = vmatmul.mubr.bf16.gmra.mrb[0].mxu0 %v615
      %v1056 = vpop.f32.mrb[0].mxu0
      %v1057 = vadd.f32 %v324, %v1056
      %v1058 = vpop.f32.mrb[0].mxu0
      %v1059 = vpop.f32.mrb[0].mxu0
      %v1060 = vadd.f32 %v324, %v1059
      %v1061 = vpop.f32.mrb[0].mxu0
      %1062 = vmatprep.mubr.bf16.mxu0 0
      %1063 = vmatmul.mubr.bf16.gmra.mrb[0].mxu0 %v616
      %v1064 = vpop.f32.mrb[0].mxu0
      %v1065 = vadd.f32 %v324, %v1064
      %v1066 = vpop.f32.mrb[0].mxu0
      %v1067 = vpop.f32.mrb[0].mxu0
      %v1068 = vadd.f32 %v324, %v1067
      %v1069 = vpop.f32.mrb[0].mxu0
      %1070 = vmatprep.mubr.bf16.mxu0 0
      %1071 = vmatmul.mubr.bf16.gmra.mrb[0].mxu0 %v617
      %v1072 = vpop.f32.mrb[0].mxu0
      %v1073 = vadd.f32 %v324, %v1072
      %v1074 = vpop.f32.mrb[0].mxu0
      %v1075 = vpop.f32.mrb[0].mxu0
      %v1076 = vadd.f32 %v324, %v1075
      %v1077 = vpop.f32.mrb[0].mxu0
      %1078 = vmatprep.mubr.bf16.mxu0 0
      %1079 = vmatmul.mubr.bf16.gmra.mrb[0].mxu0 %v618
      %v1080 = vpop.f32.mrb[0].mxu0
      %v1081 = vadd.f32 %v324, %v1080
      %v1082 = vpop.f32.mrb[0].mxu0
      %v1083 = vpop.f32.mrb[0].mxu0
      %v1084 = vadd.f32 %v324, %v1083
      %v1085 = vpop.f32.mrb[0].mxu0
      %1086 = vmatprep.mubr.bf16.mxu0 0
      %1087 = vmatmul.mubr.bf16.gmra.mrb[0].mxu0 %v619
      %v1088 = vpop.f32.mrb[0].mxu0
      %v1089 = vadd.f32 %v324, %v1088
      %v1090 = vpop.f32.mrb[0].mxu0
      %v1091 = vpop.f32.mrb[0].mxu0
      %v1092 = vadd.f32 %v324, %v1091
      %v1093 = vpop.f32.mrb[0].mxu0
      %1094 = vmatprep.mubr.bf16.mxu0 0
      %1095 = vmatmul.mubr.bf16.gmra.mrb[0].mxu0 %v620
      %v1096 = vpop.f32.mrb[0].mxu0
      %v1097 = vadd.f32 %v324, %v1096
      %v1098 = vpop.f32.mrb[0].mxu0
      %v1099 = vpop.f32.mrb[0].mxu0
      %v1100 = vadd.f32 %v324, %v1099
      %v1101 = vpop.f32.mrb[0].mxu0
      %1102 = vmatprep.mubr.bf16.mxu0 0
      %1103 = vmatmul.mubr.bf16.gmra.mrb[0].mxu0 %v621
      %v1104 = vpop.f32.mrb[0].mxu0
      %v1105 = vadd.f32 %v324, %v1104
      %v1106 = vpop.f32.mrb[0].mxu0
      %v1107 = vpop.f32.mrb[0].mxu0
      %v1108 = vadd.f32 %v324, %v1107
      %v1109 = vpop.f32.mrb[0].mxu0
      %1110 = vmatprep.mubr.bf16.mxu0 0
      %1111 = vmatmul.mubr.bf16.gmra.mrb[0].mxu0 %v622
      %v1112 = vpop.f32.mrb[0].mxu0
      %v1113 = vadd.f32 %v324, %v1112
      %v1114 = vpop.f32.mrb[0].mxu0
      %v1115 = vpop.f32.mrb[0].mxu0
      %v1116 = vadd.f32 %v324, %v1115
      %v1117 = vpop.f32.mrb[0].mxu0
      %1118 = vmatprep.mubr.bf16.mxu0 0
      %1119 = vmatmul.mubr.bf16.gmra.mrb[0].mxu0 %v623
      %v1120 = vpop.f32.mrb[0].mxu0
      %v1121 = vadd.f32 %v324, %v1120
      %v1122 = vpop.f32.mrb[0].mxu0
      %v1123 = vpop.f32.mrb[0].mxu0
      %v1124 = vadd.f32 %v324, %v1123
      %v1125 = vpop.f32.mrb[0].mxu0
      %1126 = vmatprep.mubr.bf16.mxu0 0
      %1127 = vmatmul.mubr.bf16.gmra.mrb[0].mxu0 %v624
      %v1128 = vpop.f32.mrb[0].mxu0
      %v1129 = vadd.f32 %v324, %v1128
      %v1130 = vpop.f32.mrb[0].mxu0
      %v1131 = vpop.f32.mrb[0].mxu0
      %v1132 = vadd.f32 %v324, %v1131
      %v1133 = vpop.f32.mrb[0].mxu0
      %1134 = vmatprep.mubr.bf16.mxu0 0
      %1135 = vmatmul.mubr.bf16.gmra.mrb[0].mxu0 %v625
      %v1136 = vpop.f32.mrb[0].mxu0
      %v1137 = vadd.f32 %v324, %v1136
      %v1138 = vpop.f32.mrb[0].mxu0
      %v1139 = vpop.f32.mrb[0].mxu0
      %v1140 = vadd.f32 %v324, %v1139
      %v1141 = vpop.f32.mrb[0].mxu0
      %1142 = vmatprep.mubr.bf16.mxu0 0
      %1143 = vmatmul.mubr.bf16.gmra.mrb[0].mxu0 %v626
      %v1144 = vpop.f32.mrb[0].mxu0
      %v1145 = vadd.f32 %v324, %v1144
      %v1146 = vpop.f32.mrb[0].mxu0
      %v1147 = vpop.f32.mrb[0].mxu0
      %v1148 = vadd.f32 %v324, %v1147
      %v1149 = vpop.f32.mrb[0].mxu0
      %1150 = vmatprep.mubr.bf16.mxu0 0
      %1151 = vmatmul.mubr.bf16.gmra.mrb[0].mxu0 %v627
      %v1152 = vpop.f32.mrb[0].mxu0
      %v1153 = vadd.f32 %v324, %v1152
      %v1154 = vpop.f32.mrb[0].mxu0
      %v1155 = vpop.f32.mrb[0].mxu0
      %v1156 = vadd.f32 %v324, %v1155
      %v1157 = vpop.f32.mrb[0].mxu0
      %1158 = vmatprep.mubr.bf16.mxu0 0
      %1159 = vmatmul.mubr.bf16.gmra.mrb[0].mxu0 %v628
      %v1160 = vpop.f32.mrb[0].mxu0
      %v1161 = vadd.f32 %v324, %v1160
      %v1162 = vpop.f32.mrb[0].mxu0
      %v1163 = vpop.f32.mrb[0].mxu0
      %v1164 = vadd.f32 %v324, %v1163
      %v1165 = vpop.f32.mrb[0].mxu0
      %1166 = vmatprep.mubr.bf16.mxu0 0
      %1167 = vmatmul.mubr.bf16.gmra.mrb[0].mxu0 %v629
      %v1168 = vpop.f32.mrb[0].mxu0
      %v1169 = vadd.f32 %v324, %v1168
      %v1170 = vpop.f32.mrb[0].mxu0
      %v1171 = vpop.f32.mrb[0].mxu0
      %v1172 = vadd.f32 %v324, %v1171
      %v1173 = vpop.f32.mrb[0].mxu0
      %1174 = vmatprep.mubr.bf16.mxu0 0
      %1175 = vmatmul.mubr.bf16.gmra.mrb[0].mxu0 %v630
      %v1176 = vpop.f32.mrb[0].mxu0
      %v1177 = vadd.f32 %v324, %v1176
      %v1178 = vpop.f32.mrb[0].mxu0
      %v1179 = vpop.f32.mrb[0].mxu0
      %v1180 = vadd.f32 %v324, %v1179
      %v1181 = vpop.f32.mrb[0].mxu0
      %1182 = vmatprep.mubr.bf16.mxu0 0
      %1183 = vmatmul.mubr.bf16.gmra.mrb[0].mxu0 %v631
      %v1184 = vpop.f32.mrb[0].mxu0
      %v1185 = vadd.f32 %v324, %v1184
      %v1186 = vpop.f32.mrb[0].mxu0
      %v1187 = vpop.f32.mrb[0].mxu0
      %v1188 = vadd.f32 %v324, %v1187
      %v1189 = vpop.f32.mrb[0].mxu0
      %1190 = vmatprep.mubr.bf16.mxu0 0
      %1191 = vmatmul.mubr.bf16.gmra.mrb[0].mxu0 %v632
      %v1192 = vpop.f32.mrb[0].mxu0
      %v1193 = vadd.f32 %v324, %v1192
      %v1194 = vpop.f32.mrb[0].mxu0
      %v1195 = vpop.f32.mrb[0].mxu0
      %v1196 = vadd.f32 %v324, %v1195
      %v1197 = vpop.f32.mrb[0].mxu0
      %1198 = vmatprep.mubr.bf16.mxu0 0
      %1199 = vmatmul.mubr.bf16.gmra.mrb[0].mxu0 %v633
      %v1200 = vpop.f32.mrb[0].mxu0
      %v1201 = vadd.f32 %v324, %v1200
      %v1202 = vpop.f32.mrb[0].mxu0
      %v1203 = vpop.f32.mrb[0].mxu0
      %v1204 = vadd.f32 %v324, %v1203
      %v1205 = vpop.f32.mrb[0].mxu0
      %1206 = vmatprep.mubr.bf16.mxu0 0
      %1207 = vmatmul.mubr.bf16.gmra.mrb[0].mxu0 %v634
      %v1208 = vpop.f32.mrb[0].mxu0
      %v1209 = vadd.f32 %v324, %v1208
      %v1210 = vpop.f32.mrb[0].mxu0
      %v1211 = vpop.f32.mrb[0].mxu0
      %v1212 = vadd.f32 %v324, %v1211
      %v1213 = vpop.f32.mrb[0].mxu0
      %1214 = vmatprep.mubr.bf16.mxu0 0
      %1215 = vmatmul.mubr.bf16.gmra.mrb[0].mxu0 %v635
      %v1216 = vpop.f32.mrb[0].mxu0
      %v1217 = vadd.f32 %v324, %v1216
      %v1218 = vpop.f32.mrb[0].mxu0
      %v1219 = vpop.f32.mrb[0].mxu0
      %v1220 = vadd.f32 %v324, %v1219
      %v1221 = vpop.f32.mrb[0].mxu0
      %1222 = vmatprep.mubr.bf16.mxu0 0
      %1223 = vmatmul.mubr.bf16.gmra.mrb[0].mxu0 %v636
      %v1224 = vpop.f32.mrb[0].mxu0
      %v1225 = vadd.f32 %v324, %v1224
      %v1226 = vpop.f32.mrb[0].mxu0
      %v1227 = vpop.f32.mrb[0].mxu0
      %v1228 = vadd.f32 %v324, %v1227
      %v1229 = vpop.f32.mrb[0].mxu0
      %1230 = vmatprep.mubr.bf16.mxu0 0
      %1231 = vmatmul.mubr.bf16.gmra.mrb[0].mxu0 %v637
      %v1232 = vpop.f32.mrb[0].mxu0
      %v1233 = vadd.f32 %v324, %v1232
      %v1234 = vpop.f32.mrb[0].mxu0
      %v1235 = vpop.f32.mrb[0].mxu0
      %v1236 = vadd.f32 %v324, %v1235
      %v1237 = vpop.f32.mrb[0].mxu0
      %1238 = vmatprep.mubr.bf16.mxu0 0
      %1239 = vmatmul.mubr.bf16.gmra.mrb[0].mxu0 %v638
      %v1240 = vpop.f32.mrb[0].mxu0
      %v1241 = vadd.f32 %v324, %v1240
      %v1242 = vpop.f32.mrb[0].mxu0
      %v1243 = vpop.f32.mrb[0].mxu0
      %v1244 = vadd.f32 %v324, %v1243
      %v1245 = vpop.f32.mrb[0].mxu0
      %1246 = vmatprep.mubr.bf16.mxu0 0
      %1247 = vmatmul.mubr.bf16.gmra.mrb[0].mxu0 %v639
      %v1248 = vpop.f32.mrb[0].mxu0
      %v1249 = vadd.f32 %v324, %v1248
      %v1250 = vpop.f32.mrb[0].mxu0
      %v1251 = vpop.f32.mrb[0].mxu0
      %v1252 = vadd.f32 %v324, %v1251
      %v1253 = vpop.f32.mrb[0].mxu0
      %1254 = vmatprep.mubr.bf16.mxu0 0
      %1255 = vmatmul.mubr.bf16.gmra.mrb[0].mxu0 %v640
      %v1256 = vpop.f32.mrb[0].mxu0
      %v1257 = vadd.f32 %v324, %v1256
      %v1258 = vpop.f32.mrb[0].mxu0
      %v1259 = vpop.f32.mrb[0].mxu0
      %v1260 = vadd.f32 %v324, %v1259
      %v1261 = vpop.f32.mrb[0].mxu0
      %1262 = vmatprep.mubr.bf16.mxu0 0
      %1263 = vmatmul.mubr.bf16.gmra.mrb[0].mxu0 %v641
      %v1264 = vpop.f32.mrb[0].mxu0
      %v1265 = vadd.f32 %v324, %v1264
      %v1266 = vpop.f32.mrb[0].mxu0
      %v1267 = vpop.f32.mrb[0].mxu0
      %v1268 = vadd.f32 %v324, %v1267
      %v1269 = vpop.f32.mrb[0].mxu0
      %1270 = vmatprep.mubr.bf16.mxu0 0
      %1271 = vmatmul.mubr.bf16.gmra.mrb[0].mxu0 %v642
      %v1272 = vpop.f32.mrb[0].mxu0
      %v1273 = vadd.f32 %v324, %v1272
      %v1274 = vpop.f32.mrb[0].mxu0
      %v1275 = vpop.f32.mrb[0].mxu0
      %v1276 = vadd.f32 %v324, %v1275
      %v1277 = vpop.f32.mrb[0].mxu0
      %1278 = vmatprep.mubr.bf16.mxu0 0
      %1279 = vmatmul.mubr.bf16.gmra.mrb[0].mxu0 %v643
      %v1280 = vpop.f32.mrb[0].mxu0
      %v1281 = vadd.f32 %v324, %v1280
      %v1282 = vpop.f32.mrb[0].mxu0
      %v1283 = vpop.f32.mrb[0].mxu0
      %v1284 = vadd.f32 %v324, %v1283
      %v1285 = vpop.f32.mrb[0].mxu0
      %1286 = vmatprep.mubr.bf16.mxu0 0
      %1287 = vmatmul.mubr.bf16.gmra.mrb[0].mxu0 %v644
      %v1288 = vpop.f32.mrb[0].mxu0
      %v1289 = vadd.f32 %v324, %v1288
      %v1290 = vpop.f32.mrb[0].mxu0
      %v1291 = vpop.f32.mrb[0].mxu0
      %v1292 = vadd.f32 %v324, %v1291
      %v1293 = vpop.f32.mrb[0].mxu0
      %1294 = vmatprep.mubr.bf16.mxu0 0
      %1295 = vmatmul.mubr.bf16.gmra.mrb[0].mxu0 %v645
      %v1296 = vpop.f32.mrb[0].mxu0
      %v1297 = vadd.f32 %v324, %v1296
      %v1298 = vpop.f32.mrb[0].mxu0
      %v1299 = vpop.f32.mrb[0].mxu0
      %v1300 = vadd.f32 %v324, %v1299
      %v1301 = vpop.f32.mrb[0].mxu0
      %1302 = vdwg.mxu0
      %vm1303 = vcmp.ge.f32.partialorder %v793, 0.0
      %vm1304 = vcmp.ge.f32.partialorder %v796, 0.0
      %vm1305 = vcmp.ge.f32.partialorder %v801, 0.0
      %vm1306 = vcmp.ge.f32.partialorder %v804, 0.0
      %vm1307 = vcmp.ge.f32.partialorder %v809, 0.0
      %vm1308 = vcmp.ge.f32.partialorder %v812, 0.0
      %vm1309 = vcmp.ge.f32.partialorder %v817, 0.0
      %vm1310 = vcmp.ge.f32.partialorder %v820, 0.0
      %vm1311 = vcmp.ge.f32.partialorder %v825, 0.0
      %vm1312 = vcmp.ge.f32.partialorder %v828, 0.0
      %vm1313 = vcmp.ge.f32.partialorder %v833, 0.0
      %vm1314 = vcmp.ge.f32.partialorder %v836, 0.0
      %vm1315 = vcmp.ge.f32.partialorder %v841, 0.0
      %vm1316 = vcmp.ge.f32.partialorder %v844, 0.0
      %vm1317 = vcmp.ge.f32.partialorder %v849, 0.0
      %vm1318 = vcmp.ge.f32.partialorder %v852, 0.0
      %vm1319 = vcmp.ge.f32.partialorder %v857, 0.0
      %vm1320 = vcmp.ge.f32.partialorder %v860, 0.0
      %vm1321 = vcmp.ge.f32.partialorder %v865, 0.0
      %vm1322 = vcmp.ge.f32.partialorder %v868, 0.0
      %vm1323 = vcmp.ge.f32.partialorder %v873, 0.0
      %vm1324 = vcmp.ge.f32.partialorder %v876, 0.0
      %vm1325 = vcmp.ge.f32.partialorder %v881, 0.0
      %vm1326 = vcmp.ge.f32.partialorder %v884, 0.0
      %vm1327 = vcmp.ge.f32.partialorder %v889, 0.0
      %vm1328 = vcmp.ge.f32.partialorder %v892, 0.0
      %vm1329 = vcmp.ge.f32.partialorder %v897, 0.0
      %vm1330 = vcmp.ge.f32.partialorder %v900, 0.0
      %vm1331 = vcmp.ge.f32.partialorder %v905, 0.0
      %vm1332 = vcmp.ge.f32.partialorder %v908, 0.0
      %vm1333 = vcmp.ge.f32.partialorder %v913, 0.0
      %vm1334 = vcmp.ge.f32.partialorder %v916, 0.0
      %vm1335 = vcmp.ge.f32.partialorder %v921, 0.0
      %vm1336 = vcmp.ge.f32.partialorder %v924, 0.0
      %vm1337 = vcmp.ge.f32.partialorder %v929, 0.0
      %vm1338 = vcmp.ge.f32.partialorder %v932, 0.0
      %vm1339 = vcmp.ge.f32.partialorder %v937, 0.0
      %vm1340 = vcmp.ge.f32.partialorder %v940, 0.0
      %vm1341 = vcmp.ge.f32.partialorder %v945, 0.0
      %vm1342 = vcmp.ge.f32.partialorder %v948, 0.0
      %vm1343 = vcmp.ge.f32.partialorder %v953, 0.0
      %vm1344 = vcmp.ge.f32.partialorder %v956, 0.0
      %vm1345 = vcmp.ge.f32.partialorder %v961, 0.0
      %vm1346 = vcmp.ge.f32.partialorder %v964, 0.0
      %vm1347 = vcmp.ge.f32.partialorder %v969, 0.0
      %vm1348 = vcmp.ge.f32.partialorder %v972, 0.0
      %vm1349 = vcmp.ge.f32.partialorder %v977, 0.0
      %vm1350 = vcmp.ge.f32.partialorder %v980, 0.0
      %vm1351 = vcmp.ge.f32.partialorder %v985, 0.0
      %vm1352 = vcmp.ge.f32.partialorder %v988, 0.0
      %vm1353 = vcmp.ge.f32.partialorder %v993, 0.0
      %vm1354 = vcmp.ge.f32.partialorder %v996, 0.0
      %vm1355 = vcmp.ge.f32.partialorder %v1001, 0.0
      %vm1356 = vcmp.ge.f32.partialorder %v1004, 0.0
      %vm1357 = vcmp.ge.f32.partialorder %v1009, 0.0
      %vm1358 = vcmp.ge.f32.partialorder %v1012, 0.0
      %vm1359 = vcmp.ge.f32.partialorder %v1017, 0.0
      %vm1360 = vcmp.ge.f32.partialorder %v1020, 0.0
      %vm1361 = vcmp.ge.f32.partialorder %v1025, 0.0
      %vm1362 = vcmp.ge.f32.partialorder %v1028, 0.0
      %vm1363 = vcmp.ge.f32.partialorder %v1033, 0.0
      %vm1364 = vcmp.ge.f32.partialorder %v1036, 0.0
      %vm1365 = vcmp.ge.f32.partialorder %v1041, 0.0
      %vm1366 = vcmp.ge.f32.partialorder %v1044, 0.0
      %vm1367 = vcmp.ge.f32.partialorder %v1049, 0.0
      %vm1368 = vcmp.ge.f32.partialorder %v1052, 0.0
      %vm1369 = vcmp.ge.f32.partialorder %v1057, 0.0
      %vm1370 = vcmp.ge.f32.partialorder %v1060, 0.0
      %vm1371 = vcmp.ge.f32.partialorder %v1065, 0.0
      %vm1372 = vcmp.ge.f32.partialorder %v1068, 0.0
      %vm1373 = vcmp.ge.f32.partialorder %v1073, 0.0
      %vm1374 = vcmp.ge.f32.partialorder %v1076, 0.0
      %vm1375 = vcmp.ge.f32.partialorder %v1081, 0.0
      %vm1376 = vcmp.ge.f32.partialorder %v1084, 0.0
      %vm1377 = vcmp.ge.f32.partialorder %v1089, 0.0
      %vm1378 = vcmp.ge.f32.partialorder %v1092, 0.0
      %vm1379 = vcmp.ge.f32.partialorder %v1097, 0.0
      %vm1380 = vcmp.ge.f32.partialorder %v1100, 0.0
      %vm1381 = vcmp.ge.f32.partialorder %v1105, 0.0
      %vm1382 = vcmp.ge.f32.partialorder %v1108, 0.0
      %vm1383 = vcmp.ge.f32.partialorder %v1113, 0.0
      %vm1384 = vcmp.ge.f32.partialorder %v1116, 0.0
      %vm1385 = vcmp.ge.f32.partialorder %v1121, 0.0
      %vm1386 = vcmp.ge.f32.partialorder %v1124, 0.0
      %vm1387 = vcmp.ge.f32.partialorder %v1129, 0.0
      %vm1388 = vcmp.ge.f32.partialorder %v1132, 0.0
      %vm1389 = vcmp.ge.f32.partialorder %v1137, 0.0
      %vm1390 = vcmp.ge.f32.partialorder %v1140, 0.0
      %vm1391 = vcmp.ge.f32.partialorder %v1145, 0.0
      %vm1392 = vcmp.ge.f32.partialorder %v1148, 0.0
      %vm1393 = vcmp.ge.f32.partialorder %v1153, 0.0
      %vm1394 = vcmp.ge.f32.partialorder %v1156, 0.0
      %vm1395 = vcmp.ge.f32.partialorder %v1161, 0.0
      %vm1396 = vcmp.ge.f32.partialorder %v1164, 0.0
      %vm1397 = vcmp.ge.f32.partialorder %v1169, 0.0
      %vm1398 = vcmp.ge.f32.partialorder %v1172, 0.0
      %vm1399 = vcmp.ge.f32.partialorder %v1177, 0.0
      %vm1400 = vcmp.ge.f32.partialorder %v1180, 0.0
      %vm1401 = vcmp.ge.f32.partialorder %v1185, 0.0
      %vm1402 = vcmp.ge.f32.partialorder %v1188, 0.0
      %vm1403 = vcmp.ge.f32.partialorder %v1193, 0.0
      %vm1404 = vcmp.ge.f32.partialorder %v1196, 0.0
      %vm1405 = vcmp.ge.f32.partialorder %v1201, 0.0
      %vm1406 = vcmp.ge.f32.partialorder %v1204, 0.0
      %vm1407 = vcmp.ge.f32.partialorder %v1209, 0.0
      %vm1408 = vcmp.ge.f32.partialorder %v1212, 0.0
      %vm1409 = vcmp.ge.f32.partialorder %v1217, 0.0
      %vm1410 = vcmp.ge.f32.partialorder %v1220, 0.0
      %vm1411 = vcmp.ge.f32.partialorder %v1225, 0.0
      %vm1412 = vcmp.ge.f32.partialorder %v1228, 0.0
      %vm1413 = vcmp.ge.f32.partialorder %v1233, 0.0
      %vm1414 = vcmp.ge.f32.partialorder %v1236, 0.0
      %vm1415 = vcmp.ge.f32.partialorder %v1241, 0.0
      %vm1416 = vcmp.ge.f32.partialorder %v1244, 0.0
      %vm1417 = vcmp.ge.f32.partialorder %v1249, 0.0
      %vm1418 = vcmp.ge.f32.partialorder %v1252, 0.0
      %vm1419 = vcmp.ge.f32.partialorder %v1257, 0.0
      %vm1420 = vcmp.ge.f32.partialorder %v1260, 0.0
      %vm1421 = vcmp.ge.f32.partialorder %v1265, 0.0
      %vm1422 = vcmp.ge.f32.partialorder %v1268, 0.0
      %vm1423 = vcmp.ge.f32.partialorder %v1273, 0.0
      %vm1424 = vcmp.ge.f32.partialorder %v1276, 0.0
      %vm1425 = vcmp.ge.f32.partialorder %v1281, 0.0
      %vm1426 = vcmp.ge.f32.partialorder %v1284, 0.0
      %vm1427 = vcmp.ge.f32.partialorder %v1289, 0.0
      %vm1428 = vcmp.ge.f32.partialorder %v1292, 0.0
      %vm1429 = vcmp.ge.f32.partialorder %v1297, 0.0
      %vm1430 = vcmp.ge.f32.partialorder %v1300, 0.0
      %v1431 = vmul.f32 %v793, 0.2
      %v1432 = vmul.f32 %v796, 0.2
      %v1433 = vmul.f32 %v801, 0.2
      %v1434 = vmul.f32 %v804, 0.2
      %v1435 = vmul.f32 %v809, 0.2
      %v1436 = vmul.f32 %v812, 0.2
      %v1437 = vmul.f32 %v817, 0.2
      %v1438 = vmul.f32 %v820, 0.2
      %v1439 = vmul.f32 %v825, 0.2
      %v1440 = vmul.f32 %v828, 0.2
      %v1441 = vmul.f32 %v833, 0.2
      %v1442 = vmul.f32 %v836, 0.2
      %v1443 = vmul.f32 %v841, 0.2
      %v1444 = vmul.f32 %v844, 0.2
      %v1445 = vmul.f32 %v849, 0.2
      %v1446 = vmul.f32 %v852, 0.2
      %v1447 = vmul.f32 %v857, 0.2
      %v1448 = vmul.f32 %v860, 0.2
      %v1449 = vmul.f32 %v865, 0.2
      %v1450 = vmul.f32 %v868, 0.2
      %v1451 = vmul.f32 %v873, 0.2
      %v1452 = vmul.f32 %v876, 0.2
      %v1453 = vmul.f32 %v881, 0.2
      %v1454 = vmul.f32 %v884, 0.2
      %v1455 = vmul.f32 %v889, 0.2
      %v1456 = vmul.f32 %v892, 0.2
      %v1457 = vmul.f32 %v897, 0.2
      %v1458 = vmul.f32 %v900, 0.2
      %v1459 = vmul.f32 %v905, 0.2
      %v1460 = vmul.f32 %v908, 0.2
      %v1461 = vmul.f32 %v913, 0.2
      %v1462 = vmul.f32 %v916, 0.2
      %v1463 = vmul.f32 %v921, 0.2
      %v1464 = vmul.f32 %v924, 0.2
      %v1465 = vmul.f32 %v929, 0.2
      %v1466 = vmul.f32 %v932, 0.2
      %v1467 = vmul.f32 %v937, 0.2
      %v1468 = vmul.f32 %v940, 0.2
      %v1469 = vmul.f32 %v945, 0.2
      %v1470 = vmul.f32 %v948, 0.2
      %v1471 = vmul.f32 %v953, 0.2
      %v1472 = vmul.f32 %v956, 0.2
      %v1473 = vmul.f32 %v961, 0.2
      %v1474 = vmul.f32 %v964, 0.2
      %v1475 = vmul.f32 %v969, 0.2
      %v1476 = vmul.f32 %v972, 0.2
      %v1477 = vmul.f32 %v977, 0.2
      %v1478 = vmul.f32 %v980, 0.2
      %v1479 = vmul.f32 %v985, 0.2
      %v1480 = vmul.f32 %v988, 0.2
      %v1481 = vmul.f32 %v993, 0.2
      %v1482 = vmul.f32 %v996, 0.2
      %v1483 = vmul.f32 %v1001, 0.2
      %v1484 = vmul.f32 %v1004, 0.2
      %v1485 = vmul.f32 %v1009, 0.2
      %v1486 = vmul.f32 %v1012, 0.2
      %v1487 = vmul.f32 %v1017, 0.2
      %v1488 = vmul.f32 %v1020, 0.2
      %v1489 = vmul.f32 %v1025, 0.2
      %v1490 = vmul.f32 %v1028, 0.2
      %v1491 = vmul.f32 %v1033, 0.2
      %v1492 = vmul.f32 %v1036, 0.2
      %v1493 = vmul.f32 %v1041, 0.2
      %v1494 = vmul.f32 %v1044, 0.2
      %v1495 = vmul.f32 %v1049, 0.2
      %v1496 = vmul.f32 %v1052, 0.2
      %v1497 = vmul.f32 %v1057, 0.2
      %v1498 = vmul.f32 %v1060, 0.2
      %v1499 = vmul.f32 %v1065, 0.2
      %v1500 = vmul.f32 %v1068, 0.2
      %v1501 = vmul.f32 %v1073, 0.2
      %v1502 = vmul.f32 %v1076, 0.2
      %v1503 = vmul.f32 %v1081, 0.2
      %v1504 = vmul.f32 %v1084, 0.2
      %v1505 = vmul.f32 %v1089, 0.2
      %v1506 = vmul.f32 %v1092, 0.2
      %v1507 = vmul.f32 %v1097, 0.2
      %v1508 = vmul.f32 %v1100, 0.2
      %v1509 = vmul.f32 %v1105, 0.2
      %v1510 = vmul.f32 %v1108, 0.2
      %v1511 = vmul.f32 %v1113, 0.2
      %v1512 = vmul.f32 %v1116, 0.2
      %v1513 = vmul.f32 %v1121, 0.2
      %v1514 = vmul.f32 %v1124, 0.2
      %v1515 = vmul.f32 %v1129, 0.2
      %v1516 = vmul.f32 %v1132, 0.2
      %v1517 = vmul.f32 %v1137, 0.2
      %v1518 = vmul.f32 %v1140, 0.2
      %v1519 = vmul.f32 %v1145, 0.2
      %v1520 = vmul.f32 %v1148, 0.2
      %v1521 = vmul.f32 %v1153, 0.2
      %v1522 = vmul.f32 %v1156, 0.2
      %v1523 = vmul.f32 %v1161, 0.2
      %v1524 = vmul.f32 %v1164, 0.2
      %v1525 = vmul.f32 %v1169, 0.2
      %v1526 = vmul.f32 %v1172, 0.2
      %v1527 = vmul.f32 %v1177, 0.2
      %v1528 = vmul.f32 %v1180, 0.2
      %v1529 = vmul.f32 %v1185, 0.2
      %v1530 = vmul.f32 %v1188, 0.2
      %v1531 = vmul.f32 %v1193, 0.2
      %v1532 = vmul.f32 %v1196, 0.2
      %v1533 = vmul.f32 %v1201, 0.2
      %v1534 = vmul.f32 %v1204, 0.2
      %v1535 = vmul.f32 %v1209, 0.2
      %v1536 = vmul.f32 %v1212, 0.2
      %v1537 = vmul.f32 %v1217, 0.2
      %v1538 = vmul.f32 %v1220, 0.2
      %v1539 = vmul.f32 %v1225, 0.2
      %v1540 = vmul.f32 %v1228, 0.2
      %v1541 = vmul.f32 %v1233, 0.2
      %v1542 = vmul.f32 %v1236, 0.2
      %v1543 = vmul.f32 %v1241, 0.2
      %v1544 = vmul.f32 %v1244, 0.2
      %v1545 = vmul.f32 %v1249, 0.2
      %v1546 = vmul.f32 %v1252, 0.2
      %v1547 = vmul.f32 %v1257, 0.2
      %v1548 = vmul.f32 %v1260, 0.2
      %v1549 = vmul.f32 %v1265, 0.2
      %v1550 = vmul.f32 %v1268, 0.2
      %v1551 = vmul.f32 %v1273, 0.2
      %v1552 = vmul.f32 %v1276, 0.2
      %v1553 = vmul.f32 %v1281, 0.2
      %v1554 = vmul.f32 %v1284, 0.2
      %v1555 = vmul.f32 %v1289, 0.2
      %v1556 = vmul.f32 %v1292, 0.2
      %v1557 = vmul.f32 %v1297, 0.2
      %v1558 = vmul.f32 %v1300, 0.2
      %v1559 = vsel %vm1303, %v793, %v1431
      %v1560 = vsel %vm1304, %v796, %v1432
      %v1561 = vsel %vm1305, %v801, %v1433
      %v1562 = vsel %vm1306, %v804, %v1434
      %v1563 = vsel %vm1307, %v809, %v1435
      %v1564 = vsel %vm1308, %v812, %v1436
      %v1565 = vsel %vm1309, %v817, %v1437
      %v1566 = vsel %vm1310, %v820, %v1438
      %v1567 = vsel %vm1311, %v825, %v1439
      %v1568 = vsel %vm1312, %v828, %v1440
      %v1569 = vsel %vm1313, %v833, %v1441
      %v1570 = vsel %vm1314, %v836, %v1442
      %v1571 = vsel %vm1315, %v841, %v1443
      %v1572 = vsel %vm1316, %v844, %v1444
      %v1573 = vsel %vm1317, %v849, %v1445
      %v1574 = vsel %vm1318, %v852, %v1446
      %v1575 = vsel %vm1319, %v857, %v1447
      %v1576 = vsel %vm1320, %v860, %v1448
      %v1577 = vsel %vm1321, %v865, %v1449
      %v1578 = vsel %vm1322, %v868, %v1450
      %v1579 = vsel %vm1323, %v873, %v1451
      %v1580 = vsel %vm1324, %v876, %v1452
      %v1581 = vsel %vm1325, %v881, %v1453
      %v1582 = vsel %vm1326, %v884, %v1454
      %v1583 = vsel %vm1327, %v889, %v1455
      %v1584 = vsel %vm1328, %v892, %v1456
      %v1585 = vsel %vm1329, %v897, %v1457
      %v1586 = vsel %vm1330, %v900, %v1458
      %v1587 = vsel %vm1331, %v905, %v1459
      %v1588 = vsel %vm1332, %v908, %v1460
      %v1589 = vsel %vm1333, %v913, %v1461
      %v1590 = vsel %vm1334, %v916, %v1462
      %v1591 = vsel %vm1335, %v921, %v1463
      %v1592 = vsel %vm1336, %v924, %v1464
      %v1593 = vsel %vm1337, %v929, %v1465
      %v1594 = vsel %vm1338, %v932, %v1466
      %v1595 = vsel %vm1339, %v937, %v1467
      %v1596 = vsel %vm1340, %v940, %v1468
      %v1597 = vsel %vm1341, %v945, %v1469
      %v1598 = vsel %vm1342, %v948, %v1470
      %v1599 = vsel %vm1343, %v953, %v1471
      %v1600 = vsel %vm1344, %v956, %v1472
      %v1601 = vsel %vm1345, %v961, %v1473
      %v1602 = vsel %vm1346, %v964, %v1474
      %v1603 = vsel %vm1347, %v969, %v1475
      %v1604 = vsel %vm1348, %v972, %v1476
      %v1605 = vsel %vm1349, %v977, %v1477
      %v1606 = vsel %vm1350, %v980, %v1478
      %v1607 = vsel %vm1351, %v985, %v1479
      %v1608 = vsel %vm1352, %v988, %v1480
      %v1609 = vsel %vm1353, %v993, %v1481
      %v1610 = vsel %vm1354, %v996, %v1482
      %v1611 = vsel %vm1355, %v1001, %v1483
      %v1612 = vsel %vm1356, %v1004, %v1484
      %v1613 = vsel %vm1357, %v1009, %v1485
      %v1614 = vsel %vm1358, %v1012, %v1486
      %v1615 = vsel %vm1359, %v1017, %v1487
      %v1616 = vsel %vm1360, %v1020, %v1488
      %v1617 = vsel %vm1361, %v1025, %v1489
      %v1618 = vsel %vm1362, %v1028, %v1490
      %v1619 = vsel %vm1363, %v1033, %v1491
      %v1620 = vsel %vm1364, %v1036, %v1492
      %v1621 = vsel %vm1365, %v1041, %v1493
      %v1622 = vsel %vm1366, %v1044, %v1494
      %v1623 = vsel %vm1367, %v1049, %v1495
      %v1624 = vsel %vm1368, %v1052, %v1496
      %v1625 = vsel %vm1369, %v1057, %v1497
      %v1626 = vsel %vm1370, %v1060, %v1498
      %v1627 = vsel %vm1371, %v1065, %v1499
      %v1628 = vsel %vm1372, %v1068, %v1500
      %v1629 = vsel %vm1373, %v1073, %v1501
      %v1630 = vsel %vm1374, %v1076, %v1502
      %v1631 = vsel %vm1375, %v1081, %v1503
      %v1632 = vsel %vm1376, %v1084, %v1504
      %v1633 = vsel %vm1377, %v1089, %v1505
      %v1634 = vsel %vm1378, %v1092, %v1506
      %v1635 = vsel %vm1379, %v1097, %v1507
      %v1636 = vsel %vm1380, %v1100, %v1508
      %v1637 = vsel %vm1381, %v1105, %v1509
      %v1638 = vsel %vm1382, %v1108, %v1510
      %v1639 = vsel %vm1383, %v1113, %v1511
      %v1640 = vsel %vm1384, %v1116, %v1512
      %v1641 = vsel %vm1385, %v1121, %v1513
      %v1642 = vsel %vm1386, %v1124, %v1514
      %v1643 = vsel %vm1387, %v1129, %v1515
      %v1644 = vsel %vm1388, %v1132, %v1516
      %v1645 = vsel %vm1389, %v1137, %v1517
      %v1646 = vsel %vm1390, %v1140, %v1518
      %v1647 = vsel %vm1391, %v1145, %v1519
      %v1648 = vsel %vm1392, %v1148, %v1520
      %v1649 = vsel %vm1393, %v1153, %v1521
      %v1650 = vsel %vm1394, %v1156, %v1522
      %v1651 = vsel %vm1395, %v1161, %v1523
      %v1652 = vsel %vm1396, %v1164, %v1524
      %v1653 = vsel %vm1397, %v1169, %v1525
      %v1654 = vsel %vm1398, %v1172, %v1526
      %v1655 = vsel %vm1399, %v1177, %v1527
      %v1656 = vsel %vm1400, %v1180, %v1528
      %v1657 = vsel %vm1401, %v1185, %v1529
      %v1658 = vsel %vm1402, %v1188, %v1530
      %v1659 = vsel %vm1403, %v1193, %v1531
      %v1660 = vsel %vm1404, %v1196, %v1532
      %v1661 = vsel %vm1405, %v1201, %v1533
      %v1662 = vsel %vm1406, %v1204, %v1534
      %v1663 = vsel %vm1407, %v1209, %v1535
      %v1664 = vsel %vm1408, %v1212, %v1536
      %v1665 = vsel %vm1409, %v1217, %v1537
      %v1666 = vsel %vm1410, %v1220, %v1538
      %v1667 = vsel %vm1411, %v1225, %v1539
      %v1668 = vsel %vm1412, %v1228, %v1540
      %v1669 = vsel %vm1413, %v1233, %v1541
      %v1670 = vsel %vm1414, %v1236, %v1542
      %v1671 = vsel %vm1415, %v1241, %v1543
      %v1672 = vsel %vm1416, %v1244, %v1544
      %v1673 = vsel %vm1417, %v1249, %v1545
      %v1674 = vsel %vm1418, %v1252, %v1546
      %v1675 = vsel %vm1419, %v1257, %v1547
      %v1676 = vsel %vm1420, %v1260, %v1548
      %v1677 = vsel %vm1421, %v1265, %v1549
      %v1678 = vsel %vm1422, %v1268, %v1550
      %v1679 = vsel %vm1423, %v1273, %v1551
      %v1680 = vsel %vm1424, %v1276, %v1552
      %v1681 = vsel %vm1425, %v1281, %v1553
      %v1682 = vsel %vm1426, %v1284, %v1554
      %v1683 = vsel %vm1427, %v1289, %v1555
      %v1684 = vsel %vm1428, %v1292, %v1556
      %v1685 = vsel %vm1429, %v1297, %v1557
      %v1686 = vsel %vm1430, %v1300, %v1558
      %1687 = vrot.lane.b32.xlu0 %v793, 64
      %v1688 = vpop.permute.xlu0 %1687
      %1689 = vrot.lane.b32.xlu0 %v796, 64
      %v1690 = vpop.permute.xlu0 %1689
      %1691 = vrot.lane.b32.xlu0 %v801, 64
      %v1692 = vpop.permute.xlu0 %1691
      %1693 = vrot.lane.b32.xlu0 %v804, 64
      %v1694 = vpop.permute.xlu0 %1693
      %1695 = vrot.lane.b32.xlu0 %v809, 64
      %v1696 = vpop.permute.xlu0 %1695
      %1697 = vrot.lane.b32.xlu0 %v812, 64
      %v1698 = vpop.permute.xlu0 %1697
      %1699 = vrot.lane.b32.xlu0 %v817, 64
      %v1700 = vpop.permute.xlu0 %1699
      %1701 = vrot.lane.b32.xlu0 %v820, 64
      %v1702 = vpop.permute.xlu0 %1701
      %1703 = vrot.lane.b32.xlu0 %v825, 64
      %v1704 = vpop.permute.xlu0 %1703
      %1705 = vrot.lane.b32.xlu0 %v828, 64
      %v1706 = vpop.permute.xlu0 %1705
      %1707 = vrot.lane.b32.xlu0 %v833, 64
      %v1708 = vpop.permute.xlu0 %1707
      %1709 = vrot.lane.b32.xlu0 %v836, 64
      %v1710 = vpop.permute.xlu0 %1709
      %1711 = vrot.lane.b32.xlu0 %v841, 64
      %v1712 = vpop.permute.xlu0 %1711
      %1713 = vrot.lane.b32.xlu0 %v844, 64
      %v1714 = vpop.permute.xlu0 %1713
      %1715 = vrot.lane.b32.xlu0 %v849, 64
      %v1716 = vpop.permute.xlu0 %1715
      %1717 = vrot.lane.b32.xlu0 %v852, 64
      %v1718 = vpop.permute.xlu0 %1717
      %1719 = vrot.lane.b32.xlu0 %v857, 64
      %v1720 = vpop.permute.xlu0 %1719
      %1721 = vrot.lane.b32.xlu0 %v860, 64
      %v1722 = vpop.permute.xlu0 %1721
      %1723 = vrot.lane.b32.xlu0 %v865, 64
      %v1724 = vpop.permute.xlu0 %1723
      %1725 = vrot.lane.b32.xlu0 %v868, 64
      %v1726 = vpop.permute.xlu0 %1725
      %1727 = vrot.lane.b32.xlu0 %v873, 64
      %v1728 = vpop.permute.xlu0 %1727
      %1729 = vrot.lane.b32.xlu0 %v876, 64
      %v1730 = vpop.permute.xlu0 %1729
      %1731 = vrot.lane.b32.xlu0 %v881, 64
      %v1732 = vpop.permute.xlu0 %1731
      %1733 = vrot.lane.b32.xlu0 %v884, 64
      %v1734 = vpop.permute.xlu0 %1733
      %1735 = vrot.lane.b32.xlu0 %v889, 64
      %v1736 = vpop.permute.xlu0 %1735
      %1737 = vrot.lane.b32.xlu0 %v892, 64
      %v1738 = vpop.permute.xlu0 %1737
      %1739 = vrot.lane.b32.xlu0 %v897, 64
      %v1740 = vpop.permute.xlu0 %1739
      %1741 = vrot.lane.b32.xlu0 %v900, 64
      %v1742 = vpop.permute.xlu0 %1741
      %1743 = vrot.lane.b32.xlu0 %v905, 64
      %v1744 = vpop.permute.xlu0 %1743
      %1745 = vrot.lane.b32.xlu0 %v908, 64
      %v1746 = vpop.permute.xlu0 %1745
      %1747 = vrot.lane.b32.xlu0 %v913, 64
      %v1748 = vpop.permute.xlu0 %1747
      %1749 = vrot.lane.b32.xlu0 %v916, 64
      %v1750 = vpop.permute.xlu0 %1749
      %1751 = vrot.lane.b32.xlu0 %v921, 64
      %v1752 = vpop.permute.xlu0 %1751
      %1753 = vrot.lane.b32.xlu0 %v924, 64
      %v1754 = vpop.permute.xlu0 %1753
      %1755 = vrot.lane.b32.xlu0 %v929, 64
      %v1756 = vpop.permute.xlu0 %1755
      %1757 = vrot.lane.b32.xlu0 %v932, 64
      %v1758 = vpop.permute.xlu0 %1757
      %1759 = vrot.lane.b32.xlu0 %v937, 64
      %v1760 = vpop.permute.xlu0 %1759
      %1761 = vrot.lane.b32.xlu0 %v940, 64
      %v1762 = vpop.permute.xlu0 %1761
      %1763 = vrot.lane.b32.xlu0 %v945, 64
      %v1764 = vpop.permute.xlu0 %1763
      %1765 = vrot.lane.b32.xlu0 %v948, 64
      %v1766 = vpop.permute.xlu0 %1765
      %1767 = vrot.lane.b32.xlu0 %v953, 64
      %v1768 = vpop.permute.xlu0 %1767
      %1769 = vrot.lane.b32.xlu0 %v956, 64
      %v1770 = vpop.permute.xlu0 %1769
      %1771 = vrot.lane.b32.xlu0 %v961, 64
      %v1772 = vpop.permute.xlu0 %1771
      %1773 = vrot.lane.b32.xlu0 %v964, 64
      %v1774 = vpop.permute.xlu0 %1773
      %1775 = vrot.lane.b32.xlu0 %v969, 64
      %v1776 = vpop.permute.xlu0 %1775
      %1777 = vrot.lane.b32.xlu0 %v972, 64
      %v1778 = vpop.permute.xlu0 %1777
      %1779 = vrot.lane.b32.xlu0 %v977, 64
      %v1780 = vpop.permute.xlu0 %1779
      %1781 = vrot.lane.b32.xlu0 %v980, 64
      %v1782 = vpop.permute.xlu0 %1781
      %1783 = vrot.lane.b32.xlu0 %v985, 64
      %v1784 = vpop.permute.xlu0 %1783
      %1785 = vrot.lane.b32.xlu0 %v988, 64
      %v1786 = vpop.permute.xlu0 %1785
      %1787 = vrot.lane.b32.xlu0 %v993, 64
      %v1788 = vpop.permute.xlu0 %1787
      %1789 = vrot.lane.b32.xlu0 %v996, 64
      %v1790 = vpop.permute.xlu0 %1789
      %1791 = vrot.lane.b32.xlu0 %v1001, 64
      %v1792 = vpop.permute.xlu0 %1791
      %1793 = vrot.lane.b32.xlu0 %v1004, 64
      %v1794 = vpop.permute.xlu0 %1793
      %1795 = vrot.lane.b32.xlu0 %v1009, 64
      %v1796 = vpop.permute.xlu0 %1795
      %1797 = vrot.lane.b32.xlu0 %v1012, 64
      %v1798 = vpop.permute.xlu0 %1797
      %1799 = vrot.lane.b32.xlu0 %v1017, 64
      %v1800 = vpop.permute.xlu0 %1799
      %1801 = vrot.lane.b32.xlu0 %v1020, 64
      %v1802 = vpop.permute.xlu0 %1801
      %1803 = vrot.lane.b32.xlu0 %v1025, 64
      %v1804 = vpop.permute.xlu0 %1803
      %1805 = vrot.lane.b32.xlu0 %v1028, 64
      %v1806 = vpop.permute.xlu0 %1805
      %1807 = vrot.lane.b32.xlu0 %v1033, 64
      %v1808 = vpop.permute.xlu0 %1807
      %1809 = vrot.lane.b32.xlu0 %v1036, 64
      %v1810 = vpop.permute.xlu0 %1809
      %1811 = vrot.lane.b32.xlu0 %v1041, 64
      %v1812 = vpop.permute.xlu0 %1811
      %1813 = vrot.lane.b32.xlu0 %v1044, 64
      %v1814 = vpop.permute.xlu0 %1813
      %1815 = vrot.lane.b32.xlu0 %v1049, 64
      %v1816 = vpop.permute.xlu0 %1815
      %1817 = vrot.lane.b32.xlu0 %v1052, 64
      %v1818 = vpop.permute.xlu0 %1817
      %1819 = vrot.lane.b32.xlu0 %v1057, 64
      %v1820 = vpop.permute.xlu0 %1819
      %1821 = vrot.lane.b32.xlu0 %v1060, 64
      %v1822 = vpop.permute.xlu0 %1821
      %1823 = vrot.lane.b32.xlu0 %v1065, 64
      %v1824 = vpop.permute.xlu0 %1823
      %1825 = vrot.lane.b32.xlu0 %v1068, 64
      %v1826 = vpop.permute.xlu0 %1825
      %1827 = vrot.lane.b32.xlu0 %v1073, 64
      %v1828 = vpop.permute.xlu0 %1827
      %1829 = vrot.lane.b32.xlu0 %v1076, 64
      %v1830 = vpop.permute.xlu0 %1829
      %1831 = vrot.lane.b32.xlu0 %v1081, 64
      %v1832 = vpop.permute.xlu0 %1831
      %1833 = vrot.lane.b32.xlu0 %v1084, 64
      %v1834 = vpop.permute.xlu0 %1833
      %1835 = vrot.lane.b32.xlu0 %v1089, 64
      %v1836 = vpop.permute.xlu0 %1835
      %1837 = vrot.lane.b32.xlu0 %v1092, 64
      %v1838 = vpop.permute.xlu0 %1837
      %1839 = vrot.lane.b32.xlu0 %v1097, 64
      %v1840 = vpop.permute.xlu0 %1839
      %1841 = vrot.lane.b32.xlu0 %v1100, 64
      %v1842 = vpop.permute.xlu0 %1841
      %1843 = vrot.lane.b32.xlu0 %v1105, 64
      %v1844 = vpop.permute.xlu0 %1843
      %1845 = vrot.lane.b32.xlu0 %v1108, 64
      %v1846 = vpop.permute.xlu0 %1845
      %1847 = vrot.lane.b32.xlu0 %v1113, 64
      %v1848 = vpop.permute.xlu0 %1847
      %1849 = vrot.lane.b32.xlu0 %v1116, 64
      %v1850 = vpop.permute.xlu0 %1849
      %1851 = vrot.lane.b32.xlu0 %v1121, 64
      %v1852 = vpop.permute.xlu0 %1851
      %1853 = vrot.lane.b32.xlu0 %v1124, 64
      %v1854 = vpop.permute.xlu0 %1853
      %1855 = vrot.lane.b32.xlu0 %v1129, 64
      %v1856 = vpop.permute.xlu0 %1855
      %1857 = vrot.lane.b32.xlu0 %v1132, 64
      %v1858 = vpop.permute.xlu0 %1857
      %1859 = vrot.lane.b32.xlu0 %v1137, 64
      %v1860 = vpop.permute.xlu0 %1859
      %1861 = vrot.lane.b32.xlu0 %v1140, 64
      %v1862 = vpop.permute.xlu0 %1861
      %1863 = vrot.lane.b32.xlu0 %v1145, 64
      %v1864 = vpop.permute.xlu0 %1863
      %1865 = vrot.lane.b32.xlu0 %v1148, 64
      %v1866 = vpop.permute.xlu0 %1865
      %1867 = vrot.lane.b32.xlu0 %v1153, 64
      %v1868 = vpop.permute.xlu0 %1867
      %1869 = vrot.lane.b32.xlu0 %v1156, 64
      %v1870 = vpop.permute.xlu0 %1869
      %1871 = vrot.lane.b32.xlu0 %v1161, 64
      %v1872 = vpop.permute.xlu0 %1871
      %1873 = vrot.lane.b32.xlu0 %v1164, 64
      %v1874 = vpop.permute.xlu0 %1873
      %1875 = vrot.lane.b32.xlu0 %v1169, 64
      %v1876 = vpop.permute.xlu0 %1875
      %1877 = vrot.lane.b32.xlu0 %v1172, 64
      %v1878 = vpop.permute.xlu0 %1877
      %1879 = vrot.lane.b32.xlu0 %v1177, 64
      %v1880 = vpop.permute.xlu0 %1879
      %1881 = vrot.lane.b32.xlu0 %v1180, 64
      %v1882 = vpop.permute.xlu0 %1881
      %1883 = vrot.lane.b32.xlu0 %v1185, 64
      %v1884 = vpop.permute.xlu0 %1883
      %1885 = vrot.lane.b32.xlu0 %v1188, 64
      %v1886 = vpop.permute.xlu0 %1885
      %1887 = vrot.lane.b32.xlu0 %v1193, 64
      %v1888 = vpop.permute.xlu0 %1887
      %1889 = vrot.lane.b32.xlu0 %v1196, 64
      %v1890 = vpop.permute.xlu0 %1889
      %1891 = vrot.lane.b32.xlu0 %v1201, 64
      %v1892 = vpop.permute.xlu0 %1891
      %1893 = vrot.lane.b32.xlu0 %v1204, 64
      %v1894 = vpop.permute.xlu0 %1893
      %1895 = vrot.lane.b32.xlu0 %v1209, 64
      %v1896 = vpop.permute.xlu0 %1895
      %1897 = vrot.lane.b32.xlu0 %v1212, 64
      %v1898 = vpop.permute.xlu0 %1897
      %1899 = vrot.lane.b32.xlu0 %v1217, 64
      %v1900 = vpop.permute.xlu0 %1899
      %1901 = vrot.lane.b32.xlu0 %v1220, 64
      %v1902 = vpop.permute.xlu0 %1901
      %1903 = vrot.lane.b32.xlu0 %v1225, 64
      %v1904 = vpop.permute.xlu0 %1903
      %1905 = vrot.lane.b32.xlu0 %v1228, 64
      %v1906 = vpop.permute.xlu0 %1905
      %1907 = vrot.lane.b32.xlu0 %v1233, 64
      %v1908 = vpop.permute.xlu0 %1907
      %1909 = vrot.lane.b32.xlu0 %v1236, 64
      %v1910 = vpop.permute.xlu0 %1909
      %1911 = vrot.lane.b32.xlu0 %v1241, 64
      %v1912 = vpop.permute.xlu0 %1911
      %1913 = vrot.lane.b32.xlu0 %v1244, 64
      %v1914 = vpop.permute.xlu0 %1913
      %1915 = vrot.lane.b32.xlu0 %v1249, 64
      %v1916 = vpop.permute.xlu0 %1915
      %1917 = vrot.lane.b32.xlu0 %v1252, 64
      %v1918 = vpop.permute.xlu0 %1917
      %1919 = vrot.lane.b32.xlu0 %v1257, 64
      %v1920 = vpop.permute.xlu0 %1919
      %1921 = vrot.lane.b32.xlu0 %v1260, 64
      %v1922 = vpop.permute.xlu0 %1921
      %1923 = vrot.lane.b32.xlu0 %v1265, 64
      %v1924 = vpop.permute.xlu0 %1923
      %1925 = vrot.lane.b32.xlu0 %v1268, 64
      %v1926 = vpop.permute.xlu0 %1925
      %1927 = vrot.lane.b32.xlu0 %v1273, 64
      %v1928 = vpop.permute.xlu0 %1927
      %1929 = vrot.lane.b32.xlu0 %v1276, 64
      %v1930 = vpop.permute.xlu0 %1929
      %1931 = vrot.lane.b32.xlu0 %v1281, 64
      %v1932 = vpop.permute.xlu0 %1931
      %1933 = vrot.lane.b32.xlu0 %v1284, 64
      %v1934 = vpop.permute.xlu0 %1933
      %1935 = vrot.lane.b32.xlu0 %v1289, 64
      %v1936 = vpop.permute.xlu0 %1935
      %1937 = vrot.lane.b32.xlu0 %v1292, 64
      %v1938 = vpop.permute.xlu0 %1937
      %1939 = vrot.lane.b32.xlu0 %v1297, 64
      %v1940 = vpop.permute.xlu0 %1939
      %1941 = vrot.lane.b32.xlu0 %v1300, 64
      %v1942 = vpop.permute.xlu0 %1941
      %v1943 = vmul.f32 %v1688, 0.5
      %v1944 = vmul.f32 %v1690, 0.5
      %v1945 = vmul.f32 %v1692, 0.5
      %v1946 = vmul.f32 %v1694, 0.5
      %v1947 = vmul.f32 %v1696, 0.5
      %v1948 = vmul.f32 %v1698, 0.5
      %v1949 = vmul.f32 %v1700, 0.5
      %v1950 = vmul.f32 %v1702, 0.5
      %v1951 = vmul.f32 %v1704, 0.5
      %v1952 = vmul.f32 %v1706, 0.5
      %v1953 = vmul.f32 %v1708, 0.5
      %v1954 = vmul.f32 %v1710, 0.5
      %v1955 = vmul.f32 %v1712, 0.5
      %v1956 = vmul.f32 %v1714, 0.5
      %v1957 = vmul.f32 %v1716, 0.5
      %v1958 = vmul.f32 %v1718, 0.5
      %v1959 = vmul.f32 %v1720, 0.5
      %v1960 = vmul.f32 %v1722, 0.5
      %v1961 = vmul.f32 %v1724, 0.5
      %v1962 = vmul.f32 %v1726, 0.5
      %v1963 = vmul.f32 %v1728, 0.5
      %v1964 = vmul.f32 %v1730, 0.5
      %v1965 = vmul.f32 %v1732, 0.5
      %v1966 = vmul.f32 %v1734, 0.5
      %v1967 = vmul.f32 %v1736, 0.5
      %v1968 = vmul.f32 %v1738, 0.5
      %v1969 = vmul.f32 %v1740, 0.5
      %v1970 = vmul.f32 %v1742, 0.5
      %v1971 = vmul.f32 %v1744, 0.5
      %v1972 = vmul.f32 %v1746, 0.5
      %v1973 = vmul.f32 %v1748, 0.5
      %v1974 = vmul.f32 %v1750, 0.5
      %v1975 = vmul.f32 %v1752, 0.5
      %v1976 = vmul.f32 %v1754, 0.5
      %v1977 = vmul.f32 %v1756, 0.5
      %v1978 = vmul.f32 %v1758, 0.5
      %v1979 = vmul.f32 %v1760, 0.5
      %v1980 = vmul.f32 %v1762, 0.5
      %v1981 = vmul.f32 %v1764, 0.5
      %v1982 = vmul.f32 %v1766, 0.5
      %v1983 = vmul.f32 %v1768, 0.5
      %v1984 = vmul.f32 %v1770, 0.5
      %v1985 = vmul.f32 %v1772, 0.5
      %v1986 = vmul.f32 %v1774, 0.5
      %v1987 = vmul.f32 %v1776, 0.5
      %v1988 = vmul.f32 %v1778, 0.5
      %v1989 = vmul.f32 %v1780, 0.5
      %v1990 = vmul.f32 %v1782, 0.5
      %v1991 = vmul.f32 %v1784, 0.5
      %v1992 = vmul.f32 %v1786, 0.5
      %v1993 = vmul.f32 %v1788, 0.5
      %v1994 = vmul.f32 %v1790, 0.5
      %v1995 = vmul.f32 %v1792, 0.5
      %v1996 = vmul.f32 %v1794, 0.5
      %v1997 = vmul.f32 %v1796, 0.5
      %v1998 = vmul.f32 %v1798, 0.5
      %v1999 = vmul.f32 %v1800, 0.5
      %v2000 = vmul.f32 %v1802, 0.5
      %v2001 = vmul.f32 %v1804, 0.5
      %v2002 = vmul.f32 %v1806, 0.5
      %v2003 = vmul.f32 %v1808, 0.5
      %v2004 = vmul.f32 %v1810, 0.5
      %v2005 = vmul.f32 %v1812, 0.5
      %v2006 = vmul.f32 %v1814, 0.5
      %v2007 = vmul.f32 %v1816, 0.5
      %v2008 = vmul.f32 %v1818, 0.5
      %v2009 = vmul.f32 %v1820, 0.5
      %v2010 = vmul.f32 %v1822, 0.5
      %v2011 = vmul.f32 %v1824, 0.5
      %v2012 = vmul.f32 %v1826, 0.5
      %v2013 = vmul.f32 %v1828, 0.5
      %v2014 = vmul.f32 %v1830, 0.5
      %v2015 = vmul.f32 %v1832, 0.5
      %v2016 = vmul.f32 %v1834, 0.5
      %v2017 = vmul.f32 %v1836, 0.5
      %v2018 = vmul.f32 %v1838, 0.5
      %v2019 = vmul.f32 %v1840, 0.5
      %v2020 = vmul.f32 %v1842, 0.5
      %v2021 = vmul.f32 %v1844, 0.5
      %v2022 = vmul.f32 %v1846, 0.5
      %v2023 = vmul.f32 %v1848, 0.5
      %v2024 = vmul.f32 %v1850, 0.5
      %v2025 = vmul.f32 %v1852, 0.5
      %v2026 = vmul.f32 %v1854, 0.5
      %v2027 = vmul.f32 %v1856, 0.5
      %v2028 = vmul.f32 %v1858, 0.5
      %v2029 = vmul.f32 %v1860, 0.5
      %v2030 = vmul.f32 %v1862, 0.5
      %v2031 = vmul.f32 %v1864, 0.5
      %v2032 = vmul.f32 %v1866, 0.5
      %v2033 = vmul.f32 %v1868, 0.5
      %v2034 = vmul.f32 %v1870, 0.5
      %v2035 = vmul.f32 %v1872, 0.5
      %v2036 = vmul.f32 %v1874, 0.5
      %v2037 = vmul.f32 %v1876, 0.5
      %v2038 = vmul.f32 %v1878, 0.5
      %v2039 = vmul.f32 %v1880, 0.5
      %v2040 = vmul.f32 %v1882, 0.5
      %v2041 = vmul.f32 %v1884, 0.5
      %v2042 = vmul.f32 %v1886, 0.5
      %v2043 = vmul.f32 %v1888, 0.5
      %v2044 = vmul.f32 %v1890, 0.5
      %v2045 = vmul.f32 %v1892, 0.5
      %v2046 = vmul.f32 %v1894, 0.5
      %v2047 = vmul.f32 %v1896, 0.5
      %v2048 = vmul.f32 %v1898, 0.5
      %v2049 = vmul.f32 %v1900, 0.5
      %v2050 = vmul.f32 %v1902, 0.5
      %v2051 = vmul.f32 %v1904, 0.5
      %v2052 = vmul.f32 %v1906, 0.5
      %v2053 = vmul.f32 %v1908, 0.5
      %v2054 = vmul.f32 %v1910, 0.5
      %v2055 = vmul.f32 %v1912, 0.5
      %v2056 = vmul.f32 %v1914, 0.5
      %v2057 = vmul.f32 %v1916, 0.5
      %v2058 = vmul.f32 %v1918, 0.5
      %v2059 = vmul.f32 %v1920, 0.5
      %v2060 = vmul.f32 %v1922, 0.5
      %v2061 = vmul.f32 %v1924, 0.5
      %v2062 = vmul.f32 %v1926, 0.5
      %v2063 = vmul.f32 %v1928, 0.5
      %v2064 = vmul.f32 %v1930, 0.5
      %v2065 = vmul.f32 %v1932, 0.5
      %v2066 = vmul.f32 %v1934, 0.5
      %v2067 = vmul.f32 %v1936, 0.5
      %v2068 = vmul.f32 %v1938, 0.5
      %v2069 = vmul.f32 %v1940, 0.5
      %v2070 = vmul.f32 %v1942, 0.5
      %v2071 = vtanh.pop %v1943
      %v2072 = vtanh.pop %v1944
      %v2073 = vtanh.pop %v1945
      %v2074 = vtanh.pop %v1946
      %v2075 = vtanh.pop %v1947
      %v2076 = vtanh.pop %v1948
      %v2077 = vtanh.pop %v1949
      %v2078 = vtanh.pop %v1950
      %v2079 = vtanh.pop %v1951
      %v2080 = vtanh.pop %v1952
      %v2081 = vtanh.pop %v1953
      %v2082 = vtanh.pop %v1954
      %v2083 = vtanh.pop %v1955
      %v2084 = vtanh.pop %v1956
      %v2085 = vtanh.pop %v1957
      %v2086 = vtanh.pop %v1958
      %v2087 = vtanh.pop %v1959
      %v2088 = vtanh.pop %v1960
      %v2089 = vtanh.pop %v1961
      %v2090 = vtanh.pop %v1962
      %v2091 = vtanh.pop %v1963
      %v2092 = vtanh.pop %v1964
      %v2093 = vtanh.pop %v1965
      %v2094 = vtanh.pop %v1966
      %v2095 = vtanh.pop %v1967
      %v2096 = vtanh.pop %v1968
      %v2097 = vtanh.pop %v1969
      %v2098 = vtanh.pop %v1970
      %v2099 = vtanh.pop %v1971
      %v2100 = vtanh.pop %v1972
      %v2101 = vtanh.pop %v1973
      %v2102 = vtanh.pop %v1974
      %v2103 = vtanh.pop %v1975
      %v2104 = vtanh.pop %v1976
      %v2105 = vtanh.pop %v1977
      %v2106 = vtanh.pop %v1978
      %v2107 = vtanh.pop %v1979
      %v2108 = vtanh.pop %v1980
      %v2109 = vtanh.pop %v1981
      %v2110 = vtanh.pop %v1982
      %v2111 = vtanh.pop %v1983
      %v2112 = vtanh.pop %v1984
      %v2113 = vtanh.pop %v1985
      %v2114 = vtanh.pop %v1986
      %v2115 = vtanh.pop %v1987
      %v2116 = vtanh.pop %v1988
      %v2117 = vtanh.pop %v1989
      %v2118 = vtanh.pop %v1990
      %v2119 = vtanh.pop %v1991
      %v2120 = vtanh.pop %v1992
      %v2121 = vtanh.pop %v1993
      %v2122 = vtanh.pop %v1994
      %v2123 = vtanh.pop %v1995
      %v2124 = vtanh.pop %v1996
      %v2125 = vtanh.pop %v1997
      %v2126 = vtanh.pop %v1998
      %v2127 = vtanh.pop %v1999
      %v2128 = vtanh.pop %v2000
      %v2129 = vtanh.pop %v2001
      %v2130 = vtanh.pop %v2002
      %v2131 = vtanh.pop %v2003
      %v2132 = vtanh.pop %v2004
      %v2133 = vtanh.pop %v2005
      %v2134 = vtanh.pop %v2006
      %v2135 = vtanh.pop %v2007
      %v2136 = vtanh.pop %v2008
      %v2137 = vtanh.pop %v2009
      %v2138 = vtanh.pop %v2010
      %v2139 = vtanh.pop %v2011
      %v2140 = vtanh.pop %v2012
      %v2141 = vtanh.pop %v2013
      %v2142 = vtanh.pop %v2014
      %v2143 = vtanh.pop %v2015
      %v2144 = vtanh.pop %v2016
      %v2145 = vtanh.pop %v2017
      %v2146 = vtanh.pop %v2018
      %v2147 = vtanh.pop %v2019
      %v2148 = vtanh.pop %v2020
      %v2149 = vtanh.pop %v2021
      %v2150 = vtanh.pop %v2022
      %v2151 = vtanh.pop %v2023
      %v2152 = vtanh.pop %v2024
      %v2153 = vtanh.pop %v2025
      %v2154 = vtanh.pop %v2026
      %v2155 = vtanh.pop %v2027
      %v2156 = vtanh.pop %v2028
      %v2157 = vtanh.pop %v2029
      %v2158 = vtanh.pop %v2030
      %v2159 = vtanh.pop %v2031
      %v2160 = vtanh.pop %v2032
      %v2161 = vtanh.pop %v2033
      %v2162 = vtanh.pop %v2034
      %v2163 = vtanh.pop %v2035
      %v2164 = vtanh.pop %v2036
      %v2165 = vtanh.pop %v2037
      %v2166 = vtanh.pop %v2038
      %v2167 = vtanh.pop %v2039
      %v2168 = vtanh.pop %v2040
      %v2169 = vtanh.pop %v2041
      %v2170 = vtanh.pop %v2042
      %v2171 = vtanh.pop %v2043
      %v2172 = vtanh.pop %v2044
      %v2173 = vtanh.pop %v2045
      %v2174 = vtanh.pop %v2046
      %v2175 = vtanh.pop %v2047
      %v2176 = vtanh.pop %v2048
      %v2177 = vtanh.pop %v2049
      %v2178 = vtanh.pop %v2050
      %v2179 = vtanh.pop %v2051
      %v2180 = vtanh.pop %v2052
      %v2181 = vtanh.pop %v2053
      %v2182 = vtanh.pop %v2054
      %v2183 = vtanh.pop %v2055
      %v2184 = vtanh.pop %v2056
      %v2185 = vtanh.pop %v2057
      %v2186 = vtanh.pop %v2058
      %v2187 = vtanh.pop %v2059
      %v2188 = vtanh.pop %v2060
      %v2189 = vtanh.pop %v2061
      %v2190 = vtanh.pop %v2062
      %v2191 = vtanh.pop %v2063
      %v2192 = vtanh.pop %v2064
      %v2193 = vtanh.pop %v2065
      %v2194 = vtanh.pop %v2066
      %v2195 = vtanh.pop %v2067
      %v2196 = vtanh.pop %v2068
      %v2197 = vtanh.pop %v2069
      %v2198 = vtanh.pop %v2070
      %v2199 = vmul.f32 %v2071, 0.5
      %v2200 = vmul.f32 %v2072, 0.5
      %v2201 = vmul.f32 %v2073, 0.5
      %v2202 = vmul.f32 %v2074, 0.5
      %v2203 = vmul.f32 %v2075, 0.5
      %v2204 = vmul.f32 %v2076, 0.5
      %v2205 = vmul.f32 %v2077, 0.5
      %v2206 = vmul.f32 %v2078, 0.5
      %v2207 = vmul.f32 %v2079, 0.5
      %v2208 = vmul.f32 %v2080, 0.5
      %v2209 = vmul.f32 %v2081, 0.5
      %v2210 = vmul.f32 %v2082, 0.5
      %v2211 = vmul.f32 %v2083, 0.5
      %v2212 = vmul.f32 %v2084, 0.5
      %v2213 = vmul.f32 %v2085, 0.5
      %v2214 = vmul.f32 %v2086, 0.5
      %v2215 = vmul.f32 %v2087, 0.5
      %v2216 = vmul.f32 %v2088, 0.5
      %v2217 = vmul.f32 %v2089, 0.5
      %v2218 = vmul.f32 %v2090, 0.5
      %v2219 = vmul.f32 %v2091, 0.5
      %v2220 = vmul.f32 %v2092, 0.5
      %v2221 = vmul.f32 %v2093, 0.5
      %v2222 = vmul.f32 %v2094, 0.5
      %v2223 = vmul.f32 %v2095, 0.5
      %v2224 = vmul.f32 %v2096, 0.5
      %v2225 = vmul.f32 %v2097, 0.5
      %v2226 = vmul.f32 %v2098, 0.5
      %v2227 = vmul.f32 %v2099, 0.5
      %v2228 = vmul.f32 %v2100, 0.5
      %v2229 = vmul.f32 %v2101, 0.5
      %v2230 = vmul.f32 %v2102, 0.5
      %v2231 = vmul.f32 %v2103, 0.5
      %v2232 = vmul.f32 %v2104, 0.5
      %v2233 = vmul.f32 %v2105, 0.5
      %v2234 = vmul.f32 %v2106, 0.5
      %v2235 = vmul.f32 %v2107, 0.5
      %v2236 = vmul.f32 %v2108, 0.5
      %v2237 = vmul.f32 %v2109, 0.5
      %v2238 = vmul.f32 %v2110, 0.5
      %v2239 = vmul.f32 %v2111, 0.5
      %v2240 = vmul.f32 %v2112, 0.5
      %v2241 = vmul.f32 %v2113, 0.5
      %v2242 = vmul.f32 %v2114, 0.5
      %v2243 = vmul.f32 %v2115, 0.5
      %v2244 = vmul.f32 %v2116, 0.5
      %v2245 = vmul.f32 %v2117, 0.5
      %v2246 = vmul.f32 %v2118, 0.5
      %v2247 = vmul.f32 %v2119, 0.5
      %v2248 = vmul.f32 %v2120, 0.5
      %v2249 = vmul.f32 %v2121, 0.5
      %v2250 = vmul.f32 %v2122, 0.5
      %v2251 = vmul.f32 %v2123, 0.5
      %v2252 = vmul.f32 %v2124, 0.5
      %v2253 = vmul.f32 %v2125, 0.5
      %v2254 = vmul.f32 %v2126, 0.5
      %v2255 = vmul.f32 %v2127, 0.5
      %v2256 = vmul.f32 %v2128, 0.5
      %v2257 = vmul.f32 %v2129, 0.5
      %v2258 = vmul.f32 %v2130, 0.5
      %v2259 = vmul.f32 %v2131, 0.5
      %v2260 = vmul.f32 %v2132, 0.5
      %v2261 = vmul.f32 %v2133, 0.5
      %v2262 = vmul.f32 %v2134, 0.5
      %v2263 = vmul.f32 %v2135, 0.5
      %v2264 = vmul.f32 %v2136, 0.5
      %v2265 = vmul.f32 %v2137, 0.5
      %v2266 = vmul.f32 %v2138, 0.5
      %v2267 = vmul.f32 %v2139, 0.5
      %v2268 = vmul.f32 %v2140, 0.5
      %v2269 = vmul.f32 %v2141, 0.5
      %v2270 = vmul.f32 %v2142, 0.5
      %v2271 = vmul.f32 %v2143, 0.5
      %v2272 = vmul.f32 %v2144, 0.5
      %v2273 = vmul.f32 %v2145, 0.5
      %v2274 = vmul.f32 %v2146, 0.5
      %v2275 = vmul.f32 %v2147, 0.5
      %v2276 = vmul.f32 %v2148, 0.5
      %v2277 = vmul.f32 %v2149, 0.5
      %v2278 = vmul.f32 %v2150, 0.5
      %v2279 = vmul.f32 %v2151, 0.5
      %v2280 = vmul.f32 %v2152, 0.5
      %v2281 = vmul.f32 %v2153, 0.5
      %v2282 = vmul.f32 %v2154, 0.5
      %v2283 = vmul.f32 %v2155, 0.5
      %v2284 = vmul.f32 %v2156, 0.5
      %v2285 = vmul.f32 %v2157, 0.5
      %v2286 = vmul.f32 %v2158, 0.5
      %v2287 = vmul.f32 %v2159, 0.5
      %v2288 = vmul.f32 %v2160, 0.5
      %v2289 = vmul.f32 %v2161, 0.5
      %v2290 = vmul.f32 %v2162, 0.5
      %v2291 = vmul.f32 %v2163, 0.5
      %v2292 = vmul.f32 %v2164, 0.5
      %v2293 = vmul.f32 %v2165, 0.5
      %v2294 = vmul.f32 %v2166, 0.5
      %v2295 = vmul.f32 %v2167, 0.5
      %v2296 = vmul.f32 %v2168, 0.5
      %v2297 = vmul.f32 %v2169, 0.5
      %v2298 = vmul.f32 %v2170, 0.5
      %v2299 = vmul.f32 %v2171, 0.5
      %v2300 = vmul.f32 %v2172, 0.5
      %v2301 = vmul.f32 %v2173, 0.5
      %v2302 = vmul.f32 %v2174, 0.5
      %v2303 = vmul.f32 %v2175, 0.5
      %v2304 = vmul.f32 %v2176, 0.5
      %v2305 = vmul.f32 %v2177, 0.5
      %v2306 = vmul.f32 %v2178, 0.5
      %v2307 = vmul.f32 %v2179, 0.5
      %v2308 = vmul.f32 %v2180, 0.5
      %v2309 = vmul.f32 %v2181, 0.5
      %v2310 = vmul.f32 %v2182, 0.5
      %v2311 = vmul.f32 %v2183, 0.5
      %v2312 = vmul.f32 %v2184, 0.5
      %v2313 = vmul.f32 %v2185, 0.5
      %v2314 = vmul.f32 %v2186, 0.5
      %v2315 = vmul.f32 %v2187, 0.5
      %v2316 = vmul.f32 %v2188, 0.5
      %v2317 = vmul.f32 %v2189, 0.5
      %v2318 = vmul.f32 %v2190, 0.5
      %v2319 = vmul.f32 %v2191, 0.5
      %v2320 = vmul.f32 %v2192, 0.5
      %v2321 = vmul.f32 %v2193, 0.5
      %v2322 = vmul.f32 %v2194, 0.5
      %v2323 = vmul.f32 %v2195, 0.5
      %v2324 = vmul.f32 %v2196, 0.5
      %v2325 = vmul.f32 %v2197, 0.5
      %v2326 = vmul.f32 %v2198, 0.5
      %v2327 = vadd.f32 %v2199, 0.5
      %v2328 = vadd.f32 %v2200, 0.5
      %v2329 = vadd.f32 %v2201, 0.5
      %v2330 = vadd.f32 %v2202, 0.5
      %v2331 = vadd.f32 %v2203, 0.5
      %v2332 = vadd.f32 %v2204, 0.5
      %v2333 = vadd.f32 %v2205, 0.5
      %v2334 = vadd.f32 %v2206, 0.5
      %v2335 = vadd.f32 %v2207, 0.5
      %v2336 = vadd.f32 %v2208, 0.5
      %v2337 = vadd.f32 %v2209, 0.5
      %v2338 = vadd.f32 %v2210, 0.5
      %v2339 = vadd.f32 %v2211, 0.5
      %v2340 = vadd.f32 %v2212, 0.5
      %v2341 = vadd.f32 %v2213, 0.5
      %v2342 = vadd.f32 %v2214, 0.5
      %v2343 = vadd.f32 %v2215, 0.5
      %v2344 = vadd.f32 %v2216, 0.5
      %v2345 = vadd.f32 %v2217, 0.5
      %v2346 = vadd.f32 %v2218, 0.5
      %v2347 = vadd.f32 %v2219, 0.5
      %v2348 = vadd.f32 %v2220, 0.5
      %v2349 = vadd.f32 %v2221, 0.5
      %v2350 = vadd.f32 %v2222, 0.5
      %v2351 = vadd.f32 %v2223, 0.5
      %v2352 = vadd.f32 %v2224, 0.5
      %v2353 = vadd.f32 %v2225, 0.5
      %v2354 = vadd.f32 %v2226, 0.5
      %v2355 = vadd.f32 %v2227, 0.5
      %v2356 = vadd.f32 %v2228, 0.5
      %v2357 = vadd.f32 %v2229, 0.5
      %v2358 = vadd.f32 %v2230, 0.5
      %v2359 = vadd.f32 %v2231, 0.5
      %v2360 = vadd.f32 %v2232, 0.5
      %v2361 = vadd.f32 %v2233, 0.5
      %v2362 = vadd.f32 %v2234, 0.5
      %v2363 = vadd.f32 %v2235, 0.5
      %v2364 = vadd.f32 %v2236, 0.5
      %v2365 = vadd.f32 %v2237, 0.5
      %v2366 = vadd.f32 %v2238, 0.5
      %v2367 = vadd.f32 %v2239, 0.5
      %v2368 = vadd.f32 %v2240, 0.5
      %v2369 = vadd.f32 %v2241, 0.5
      %v2370 = vadd.f32 %v2242, 0.5
      %v2371 = vadd.f32 %v2243, 0.5
      %v2372 = vadd.f32 %v2244, 0.5
      %v2373 = vadd.f32 %v2245, 0.5
      %v2374 = vadd.f32 %v2246, 0.5
      %v2375 = vadd.f32 %v2247, 0.5
      %v2376 = vadd.f32 %v2248, 0.5
      %v2377 = vadd.f32 %v2249, 0.5
      %v2378 = vadd.f32 %v2250, 0.5
      %v2379 = vadd.f32 %v2251, 0.5
      %v2380 = vadd.f32 %v2252, 0.5
      %v2381 = vadd.f32 %v2253, 0.5
      %v2382 = vadd.f32 %v2254, 0.5
      %v2383 = vadd.f32 %v2255, 0.5
      %v2384 = vadd.f32 %v2256, 0.5
      %v2385 = vadd.f32 %v2257, 0.5
      %v2386 = vadd.f32 %v2258, 0.5
      %v2387 = vadd.f32 %v2259, 0.5
      %v2388 = vadd.f32 %v2260, 0.5
      %v2389 = vadd.f32 %v2261, 0.5
      %v2390 = vadd.f32 %v2262, 0.5
      %v2391 = vadd.f32 %v2263, 0.5
      %v2392 = vadd.f32 %v2264, 0.5
      %v2393 = vadd.f32 %v2265, 0.5
      %v2394 = vadd.f32 %v2266, 0.5
      %v2395 = vadd.f32 %v2267, 0.5
      %v2396 = vadd.f32 %v2268, 0.5
      %v2397 = vadd.f32 %v2269, 0.5
      %v2398 = vadd.f32 %v2270, 0.5
      %v2399 = vadd.f32 %v2271, 0.5
      %v2400 = vadd.f32 %v2272, 0.5
      %v2401 = vadd.f32 %v2273, 0.5
      %v2402 = vadd.f32 %v2274, 0.5
      %v2403 = vadd.f32 %v2275, 0.5
      %v2404 = vadd.f32 %v2276, 0.5
      %v2405 = vadd.f32 %v2277, 0.5
      %v2406 = vadd.f32 %v2278, 0.5
      %v2407 = vadd.f32 %v2279, 0.5
      %v2408 = vadd.f32 %v2280, 0.5
      %v2409 = vadd.f32 %v2281, 0.5
      %v2410 = vadd.f32 %v2282, 0.5
      %v2411 = vadd.f32 %v2283, 0.5
      %v2412 = vadd.f32 %v2284, 0.5
      %v2413 = vadd.f32 %v2285, 0.5
      %v2414 = vadd.f32 %v2286, 0.5
      %v2415 = vadd.f32 %v2287, 0.5
      %v2416 = vadd.f32 %v2288, 0.5
      %v2417 = vadd.f32 %v2289, 0.5
      %v2418 = vadd.f32 %v2290, 0.5
      %v2419 = vadd.f32 %v2291, 0.5
      %v2420 = vadd.f32 %v2292, 0.5
      %v2421 = vadd.f32 %v2293, 0.5
      %v2422 = vadd.f32 %v2294, 0.5
      %v2423 = vadd.f32 %v2295, 0.5
      %v2424 = vadd.f32 %v2296, 0.5
      %v2425 = vadd.f32 %v2297, 0.5
      %v2426 = vadd.f32 %v2298, 0.5
      %v2427 = vadd.f32 %v2299, 0.5
      %v2428 = vadd.f32 %v2300, 0.5
      %v2429 = vadd.f32 %v2301, 0.5
      %v2430 = vadd.f32 %v2302, 0.5
      %v2431 = vadd.f32 %v2303, 0.5
      %v2432 = vadd.f32 %v2304, 0.5
      %v2433 = vadd.f32 %v2305, 0.5
      %v2434 = vadd.f32 %v2306, 0.5
      %v2435 = vadd.f32 %v2307, 0.5
      %v2436 = vadd.f32 %v2308, 0.5
      %v2437 = vadd.f32 %v2309, 0.5
      %v2438 = vadd.f32 %v2310, 0.5
      %v2439 = vadd.f32 %v2311, 0.5
      %v2440 = vadd.f32 %v2312, 0.5
      %v2441 = vadd.f32 %v2313, 0.5
      %v2442 = vadd.f32 %v2314, 0.5
      %v2443 = vadd.f32 %v2315, 0.5
      %v2444 = vadd.f32 %v2316, 0.5
      %v2445 = vadd.f32 %v2317, 0.5
      %v2446 = vadd.f32 %v2318, 0.5
      %v2447 = vadd.f32 %v2319, 0.5
      %v2448 = vadd.f32 %v2320, 0.5
      %v2449 = vadd.f32 %v2321, 0.5
      %v2450 = vadd.f32 %v2322, 0.5
      %v2451 = vadd.f32 %v2323, 0.5
      %v2452 = vadd.f32 %v2324, 0.5
      %v2453 = vadd.f32 %v2325, 0.5
      %v2454 = vadd.f32 %v2326, 0.5
      %v2455 = vmul.f32 %v1559, %v2327
      %v2456 = vmul.f32 %v1560, %v2328
      %v2457 = vmul.f32 %v1561, %v2329
      %v2458 = vmul.f32 %v1562, %v2330
      %v2459 = vmul.f32 %v1563, %v2331
      %v2460 = vmul.f32 %v1564, %v2332
      %v2461 = vmul.f32 %v1565, %v2333
      %v2462 = vmul.f32 %v1566, %v2334
      %v2463 = vmul.f32 %v1567, %v2335
      %v2464 = vmul.f32 %v1568, %v2336
      %v2465 = vmul.f32 %v1569, %v2337
      %v2466 = vmul.f32 %v1570, %v2338
      %v2467 = vmul.f32 %v1571, %v2339
      %v2468 = vmul.f32 %v1572, %v2340
      %v2469 = vmul.f32 %v1573, %v2341
      %v2470 = vmul.f32 %v1574, %v2342
      %v2471 = vmul.f32 %v1575, %v2343
      %v2472 = vmul.f32 %v1576, %v2344
      %v2473 = vmul.f32 %v1577, %v2345
      %v2474 = vmul.f32 %v1578, %v2346
      %v2475 = vmul.f32 %v1579, %v2347
      %v2476 = vmul.f32 %v1580, %v2348
      %v2477 = vmul.f32 %v1581, %v2349
      %v2478 = vmul.f32 %v1582, %v2350
      %v2479 = vmul.f32 %v1583, %v2351
      %v2480 = vmul.f32 %v1584, %v2352
      %v2481 = vmul.f32 %v1585, %v2353
      %v2482 = vmul.f32 %v1586, %v2354
      %v2483 = vmul.f32 %v1587, %v2355
      %v2484 = vmul.f32 %v1588, %v2356
      %v2485 = vmul.f32 %v1589, %v2357
      %v2486 = vmul.f32 %v1590, %v2358
      %v2487 = vmul.f32 %v1591, %v2359
      %v2488 = vmul.f32 %v1592, %v2360
      %v2489 = vmul.f32 %v1593, %v2361
      %v2490 = vmul.f32 %v1594, %v2362
      %v2491 = vmul.f32 %v1595, %v2363
      %v2492 = vmul.f32 %v1596, %v2364
      %v2493 = vmul.f32 %v1597, %v2365
      %v2494 = vmul.f32 %v1598, %v2366
      %v2495 = vmul.f32 %v1599, %v2367
      %v2496 = vmul.f32 %v1600, %v2368
      %v2497 = vmul.f32 %v1601, %v2369
      %v2498 = vmul.f32 %v1602, %v2370
      %v2499 = vmul.f32 %v1603, %v2371
      %v2500 = vmul.f32 %v1604, %v2372
      %v2501 = vmul.f32 %v1605, %v2373
      %v2502 = vmul.f32 %v1606, %v2374
      %v2503 = vmul.f32 %v1607, %v2375
      %v2504 = vmul.f32 %v1608, %v2376
      %v2505 = vmul.f32 %v1609, %v2377
      %v2506 = vmul.f32 %v1610, %v2378
      %v2507 = vmul.f32 %v1611, %v2379
      %v2508 = vmul.f32 %v1612, %v2380
      %v2509 = vmul.f32 %v1613, %v2381
      %v2510 = vmul.f32 %v1614, %v2382
      %v2511 = vmul.f32 %v1615, %v2383
      %v2512 = vmul.f32 %v1616, %v2384
      %v2513 = vmul.f32 %v1617, %v2385
      %v2514 = vmul.f32 %v1618, %v2386
      %v2515 = vmul.f32 %v1619, %v2387
      %v2516 = vmul.f32 %v1620, %v2388
      %v2517 = vmul.f32 %v1621, %v2389
      %v2518 = vmul.f32 %v1622, %v2390
      %v2519 = vmul.f32 %v1623, %v2391
      %v2520 = vmul.f32 %v1624, %v2392
      %v2521 = vmul.f32 %v1625, %v2393
      %v2522 = vmul.f32 %v1626, %v2394
      %v2523 = vmul.f32 %v1627, %v2395
      %v2524 = vmul.f32 %v1628, %v2396
      %v2525 = vmul.f32 %v1629, %v2397
      %v2526 = vmul.f32 %v1630, %v2398
      %v2527 = vmul.f32 %v1631, %v2399
      %v2528 = vmul.f32 %v1632, %v2400
      %v2529 = vmul.f32 %v1633, %v2401
      %v2530 = vmul.f32 %v1634, %v2402
      %v2531 = vmul.f32 %v1635, %v2403
      %v2532 = vmul.f32 %v1636, %v2404
      %v2533 = vmul.f32 %v1637, %v2405
      %v2534 = vmul.f32 %v1638, %v2406
      %v2535 = vmul.f32 %v1639, %v2407
      %v2536 = vmul.f32 %v1640, %v2408
      %v2537 = vmul.f32 %v1641, %v2409
      %v2538 = vmul.f32 %v1642, %v2410
      %v2539 = vmul.f32 %v1643, %v2411
      %v2540 = vmul.f32 %v1644, %v2412
      %v2541 = vmul.f32 %v1645, %v2413
      %v2542 = vmul.f32 %v1646, %v2414
      %v2543 = vmul.f32 %v1647, %v2415
      %v2544 = vmul.f32 %v1648, %v2416
      %v2545 = vmul.f32 %v1649, %v2417
      %v2546 = vmul.f32 %v1650, %v2418
      %v2547 = vmul.f32 %v1651, %v2419
      %v2548 = vmul.f32 %v1652, %v2420
      %v2549 = vmul.f32 %v1653, %v2421
      %v2550 = vmul.f32 %v1654, %v2422
      %v2551 = vmul.f32 %v1655, %v2423
      %v2552 = vmul.f32 %v1656, %v2424
      %v2553 = vmul.f32 %v1657, %v2425
      %v2554 = vmul.f32 %v1658, %v2426
      %v2555 = vmul.f32 %v1659, %v2427
      %v2556 = vmul.f32 %v1660, %v2428
      %v2557 = vmul.f32 %v1661, %v2429
      %v2558 = vmul.f32 %v1662, %v2430
      %v2559 = vmul.f32 %v1663, %v2431
      %v2560 = vmul.f32 %v1664, %v2432
      %v2561 = vmul.f32 %v1665, %v2433
      %v2562 = vmul.f32 %v1666, %v2434
      %v2563 = vmul.f32 %v1667, %v2435
      %v2564 = vmul.f32 %v1668, %v2436
      %v2565 = vmul.f32 %v1669, %v2437
      %v2566 = vmul.f32 %v1670, %v2438
      %v2567 = vmul.f32 %v1671, %v2439
      %v2568 = vmul.f32 %v1672, %v2440
      %v2569 = vmul.f32 %v1673, %v2441
      %v2570 = vmul.f32 %v1674, %v2442
      %v2571 = vmul.f32 %v1675, %v2443
      %v2572 = vmul.f32 %v1676, %v2444
      %v2573 = vmul.f32 %v1677, %v2445
      %v2574 = vmul.f32 %v1678, %v2446
      %v2575 = vmul.f32 %v1679, %v2447
      %v2576 = vmul.f32 %v1680, %v2448
      %v2577 = vmul.f32 %v1681, %v2449
      %v2578 = vmul.f32 %v1682, %v2450
      %v2579 = vmul.f32 %v1683, %v2451
      %v2580 = vmul.f32 %v1684, %v2452
      %v2581 = vmul.f32 %v1685, %v2453
      %v2582 = vmul.f32 %v1686, %v2454
      %v2583 = vpack.c.bf16 %v2456, %v2455
      %v2584 = vpack.c.bf16 %v2458, %v2457
      %v2585 = vpack.c.bf16 %v2460, %v2459
      %v2586 = vpack.c.bf16 %v2462, %v2461
      %v2587 = vpack.c.bf16 %v2464, %v2463
      %v2588 = vpack.c.bf16 %v2466, %v2465
      %v2589 = vpack.c.bf16 %v2468, %v2467
      %v2590 = vpack.c.bf16 %v2470, %v2469
      %v2591 = vpack.c.bf16 %v2472, %v2471
      %v2592 = vpack.c.bf16 %v2474, %v2473
      %v2593 = vpack.c.bf16 %v2476, %v2475
      %v2594 = vpack.c.bf16 %v2478, %v2477
      %v2595 = vpack.c.bf16 %v2480, %v2479
      %v2596 = vpack.c.bf16 %v2482, %v2481
      %v2597 = vpack.c.bf16 %v2484, %v2483
      %v2598 = vpack.c.bf16 %v2486, %v2485
      %v2599 = vpack.c.bf16 %v2488, %v2487
      %v2600 = vpack.c.bf16 %v2490, %v2489
      %v2601 = vpack.c.bf16 %v2492, %v2491
      %v2602 = vpack.c.bf16 %v2494, %v2493
      %v2603 = vpack.c.bf16 %v2496, %v2495
      %v2604 = vpack.c.bf16 %v2498, %v2497
      %v2605 = vpack.c.bf16 %v2500, %v2499
      %v2606 = vpack.c.bf16 %v2502, %v2501
      %v2607 = vpack.c.bf16 %v2504, %v2503
      %v2608 = vpack.c.bf16 %v2506, %v2505
      %v2609 = vpack.c.bf16 %v2508, %v2507
      %v2610 = vpack.c.bf16 %v2510, %v2509
      %v2611 = vpack.c.bf16 %v2512, %v2511
      %v2612 = vpack.c.bf16 %v2514, %v2513
      %v2613 = vpack.c.bf16 %v2516, %v2515
      %v2614 = vpack.c.bf16 %v2518, %v2517
      %v2615 = vpack.c.bf16 %v2520, %v2519
      %v2616 = vpack.c.bf16 %v2522, %v2521
      %v2617 = vpack.c.bf16 %v2524, %v2523
      %v2618 = vpack.c.bf16 %v2526, %v2525
      %v2619 = vpack.c.bf16 %v2528, %v2527
      %v2620 = vpack.c.bf16 %v2530, %v2529
      %v2621 = vpack.c.bf16 %v2532, %v2531
      %v2622 = vpack.c.bf16 %v2534, %v2533
      %v2623 = vpack.c.bf16 %v2536, %v2535
      %v2624 = vpack.c.bf16 %v2538, %v2537
      %v2625 = vpack.c.bf16 %v2540, %v2539
      %v2626 = vpack.c.bf16 %v2542, %v2541
      %v2627 = vpack.c.bf16 %v2544, %v2543
      %v2628 = vpack.c.bf16 %v2546, %v2545
      %v2629 = vpack.c.bf16 %v2548, %v2547
      %v2630 = vpack.c.bf16 %v2550, %v2549
      %v2631 = vpack.c.bf16 %v2552, %v2551
      %v2632 = vpack.c.bf16 %v2554, %v2553
      %v2633 = vpack.c.bf16 %v2556, %v2555
      %v2634 = vpack.c.bf16 %v2558, %v2557
      %v2635 = vpack.c.bf16 %v2560, %v2559
      %v2636 = vpack.c.bf16 %v2562, %v2561
      %v2637 = vpack.c.bf16 %v2564, %v2563
      %v2638 = vpack.c.bf16 %v2566, %v2565
      %v2639 = vpack.c.bf16 %v2568, %v2567
      %v2640 = vpack.c.bf16 %v2570, %v2569
      %v2641 = vpack.c.bf16 %v2572, %v2571
      %v2642 = vpack.c.bf16 %v2574, %v2573
      %v2643 = vpack.c.bf16 %v2576, %v2575
      %v2644 = vpack.c.bf16 %v2578, %v2577
      %v2645 = vpack.c.bf16 %v2580, %v2579
      %v2646 = vpack.c.bf16 %v2582, %v2581
      %v2711 = vunpack.c.l.b16 %v2583
      %v2712 = vunpack.c.h.b16 %v2583
      %v2713 = vunpack.c.l.b16 %v2584
      %v2714 = vunpack.c.h.b16 %v2584
      %v2715 = vunpack.c.l.b16 %v2585
      %v2716 = vunpack.c.h.b16 %v2585
      %v2717 = vunpack.c.l.b16 %v2586
      %v2718 = vunpack.c.h.b16 %v2586
      %v2719 = vunpack.c.l.b16 %v2587
      %v2720 = vunpack.c.h.b16 %v2587
      %v2721 = vunpack.c.l.b16 %v2588
      %v2722 = vunpack.c.h.b16 %v2588
      %v2723 = vunpack.c.l.b16 %v2589
      %v2724 = vunpack.c.h.b16 %v2589
      %v2725 = vunpack.c.l.b16 %v2590
      %v2726 = vunpack.c.h.b16 %v2590
      %v2727 = vunpack.c.l.b16 %v2591
      %v2728 = vunpack.c.h.b16 %v2591
      %v2729 = vunpack.c.l.b16 %v2592
      %v2730 = vunpack.c.h.b16 %v2592
      %v2731 = vunpack.c.l.b16 %v2593
      %v2732 = vunpack.c.h.b16 %v2593
      %v2733 = vunpack.c.l.b16 %v2594
      %v2734 = vunpack.c.h.b16 %v2594
      %v2735 = vunpack.c.l.b16 %v2595
      %v2736 = vunpack.c.h.b16 %v2595
      %v2737 = vunpack.c.l.b16 %v2596
      %v2738 = vunpack.c.h.b16 %v2596
      %v2739 = vunpack.c.l.b16 %v2597
      %v2740 = vunpack.c.h.b16 %v2597
      %v2741 = vunpack.c.l.b16 %v2598
      %v2742 = vunpack.c.h.b16 %v2598
      %v2743 = vunpack.c.l.b16 %v2599
      %v2744 = vunpack.c.h.b16 %v2599
      %v2745 = vunpack.c.l.b16 %v2600
      %v2746 = vunpack.c.h.b16 %v2600
      %v2747 = vunpack.c.l.b16 %v2601
      %v2748 = vunpack.c.h.b16 %v2601
      %v2749 = vunpack.c.l.b16 %v2602
      %v2750 = vunpack.c.h.b16 %v2602
      %v2751 = vunpack.c.l.b16 %v2603
      %v2752 = vunpack.c.h.b16 %v2603
      %v2753 = vunpack.c.l.b16 %v2604
      %v2754 = vunpack.c.h.b16 %v2604
      %v2755 = vunpack.c.l.b16 %v2605
      %v2756 = vunpack.c.h.b16 %v2605
      %v2757 = vunpack.c.l.b16 %v2606
      %v2758 = vunpack.c.h.b16 %v2606
      %v2759 = vunpack.c.l.b16 %v2607
      %v2760 = vunpack.c.h.b16 %v2607
      %v2761 = vunpack.c.l.b16 %v2608
      %v2762 = vunpack.c.h.b16 %v2608
      %v2763 = vunpack.c.l.b16 %v2609
      %v2764 = vunpack.c.h.b16 %v2609
      %v2765 = vunpack.c.l.b16 %v2610
      %v2766 = vunpack.c.h.b16 %v2610
      %v2767 = vunpack.c.l.b16 %v2611
      %v2768 = vunpack.c.h.b16 %v2611
      %v2769 = vunpack.c.l.b16 %v2612
      %v2770 = vunpack.c.h.b16 %v2612
      %v2771 = vunpack.c.l.b16 %v2613
      %v2772 = vunpack.c.h.b16 %v2613
      %v2773 = vunpack.c.l.b16 %v2614
      %v2774 = vunpack.c.h.b16 %v2614
      %v2775 = vunpack.c.l.b16 %v2615
      %v2776 = vunpack.c.h.b16 %v2615
      %v2777 = vunpack.c.l.b16 %v2616
      %v2778 = vunpack.c.h.b16 %v2616
      %v2779 = vunpack.c.l.b16 %v2617
      %v2780 = vunpack.c.h.b16 %v2617
      %v2781 = vunpack.c.l.b16 %v2618
      %v2782 = vunpack.c.h.b16 %v2618
      %v2783 = vunpack.c.l.b16 %v2619
      %v2784 = vunpack.c.h.b16 %v2619
      %v2785 = vunpack.c.l.b16 %v2620
      %v2786 = vunpack.c.h.b16 %v2620
      %v2787 = vunpack.c.l.b16 %v2621
      %v2788 = vunpack.c.h.b16 %v2621
      %v2789 = vunpack.c.l.b16 %v2622
      %v2790 = vunpack.c.h.b16 %v2622
      %v2791 = vunpack.c.l.b16 %v2623
      %v2792 = vunpack.c.h.b16 %v2623
      %v2793 = vunpack.c.l.b16 %v2624
      %v2794 = vunpack.c.h.b16 %v2624
      %v2795 = vunpack.c.l.b16 %v2625
      %v2796 = vunpack.c.h.b16 %v2625
      %v2797 = vunpack.c.l.b16 %v2626
      %v2798 = vunpack.c.h.b16 %v2626
      %v2799 = vunpack.c.l.b16 %v2627
      %v2800 = vunpack.c.h.b16 %v2627
      %v2801 = vunpack.c.l.b16 %v2628
      %v2802 = vunpack.c.h.b16 %v2628
      %v2803 = vunpack.c.l.b16 %v2629
      %v2804 = vunpack.c.h.b16 %v2629
      %v2805 = vunpack.c.l.b16 %v2630
      %v2806 = vunpack.c.h.b16 %v2630
      %v2807 = vunpack.c.l.b16 %v2631
      %v2808 = vunpack.c.h.b16 %v2631
      %v2809 = vunpack.c.l.b16 %v2632
      %v2810 = vunpack.c.h.b16 %v2632
      %v2811 = vunpack.c.l.b16 %v2633
      %v2812 = vunpack.c.h.b16 %v2633
      %v2813 = vunpack.c.l.b16 %v2634
      %v2814 = vunpack.c.h.b16 %v2634
      %v2815 = vunpack.c.l.b16 %v2635
      %v2816 = vunpack.c.h.b16 %v2635
      %v2817 = vunpack.c.l.b16 %v2636
      %v2818 = vunpack.c.h.b16 %v2636
      %v2819 = vunpack.c.l.b16 %v2637
      %v2820 = vunpack.c.h.b16 %v2637
      %v2821 = vunpack.c.l.b16 %v2638
      %v2822 = vunpack.c.h.b16 %v2638
      %v2823 = vunpack.c.l.b16 %v2639
      %v2824 = vunpack.c.h.b16 %v2639
      %v2825 = vunpack.c.l.b16 %v2640
      %v2826 = vunpack.c.h.b16 %v2640
      %v2827 = vunpack.c.l.b16 %v2641
      %v2828 = vunpack.c.h.b16 %v2641
      %v2829 = vunpack.c.l.b16 %v2642
      %v2830 = vunpack.c.h.b16 %v2642
      %v2831 = vunpack.c.l.b16 %v2643
      %v2832 = vunpack.c.h.b16 %v2643
      %v2833 = vunpack.c.l.b16 %v2644
      %v2834 = vunpack.c.h.b16 %v2644
      %v2835 = vunpack.c.l.b16 %v2645
      %v2836 = vunpack.c.h.b16 %v2645
      %v2837 = vunpack.c.l.b16 %v2646
      %v2838 = vunpack.c.h.b16 %v2646
      %v2839 = vpack.c.b16 %v2711, %v2711
      %v2840 = vpack.c.b16 %v2712, %v2712
      %v2841 = vpack.c.b16 %v2713, %v2713
      %v2842 = vpack.c.b16 %v2714, %v2714
      %v2843 = vpack.c.b16 %v2715, %v2715
      %v2844 = vpack.c.b16 %v2716, %v2716
      %v2845 = vpack.c.b16 %v2717, %v2717
      %v2846 = vpack.c.b16 %v2718, %v2718
      %v2847 = vpack.c.b16 %v2719, %v2719
      %v2848 = vpack.c.b16 %v2720, %v2720
      %v2849 = vpack.c.b16 %v2721, %v2721
      %v2850 = vpack.c.b16 %v2722, %v2722
      %v2851 = vpack.c.b16 %v2723, %v2723
      %v2852 = vpack.c.b16 %v2724, %v2724
      %v2853 = vpack.c.b16 %v2725, %v2725
      %v2854 = vpack.c.b16 %v2726, %v2726
      %v2855 = vpack.c.b16 %v2727, %v2727
      %v2856 = vpack.c.b16 %v2728, %v2728
      %v2857 = vpack.c.b16 %v2729, %v2729
      %v2858 = vpack.c.b16 %v2730, %v2730
      %v2859 = vpack.c.b16 %v2731, %v2731
      %v2860 = vpack.c.b16 %v2732, %v2732
      %v2861 = vpack.c.b16 %v2733, %v2733
      %v2862 = vpack.c.b16 %v2734, %v2734
      %v2863 = vpack.c.b16 %v2735, %v2735
      %v2864 = vpack.c.b16 %v2736, %v2736
      %v2865 = vpack.c.b16 %v2737, %v2737
      %v2866 = vpack.c.b16 %v2738, %v2738
      %v2867 = vpack.c.b16 %v2739, %v2739
      %v2868 = vpack.c.b16 %v2740, %v2740
      %v2869 = vpack.c.b16 %v2741, %v2741
      %v2870 = vpack.c.b16 %v2742, %v2742
      %v2871 = vpack.c.b16 %v2743, %v2743
      %v2872 = vpack.c.b16 %v2744, %v2744
      %v2873 = vpack.c.b16 %v2745, %v2745
      %v2874 = vpack.c.b16 %v2746, %v2746
      %v2875 = vpack.c.b16 %v2747, %v2747
      %v2876 = vpack.c.b16 %v2748, %v2748
      %v2877 = vpack.c.b16 %v2749, %v2749
      %v2878 = vpack.c.b16 %v2750, %v2750
      %v2879 = vpack.c.b16 %v2751, %v2751
      %v2880 = vpack.c.b16 %v2752, %v2752
      %v2881 = vpack.c.b16 %v2753, %v2753
      %v2882 = vpack.c.b16 %v2754, %v2754
      %v2883 = vpack.c.b16 %v2755, %v2755
      %v2884 = vpack.c.b16 %v2756, %v2756
      %v2885 = vpack.c.b16 %v2757, %v2757
      %v2886 = vpack.c.b16 %v2758, %v2758
      %v2887 = vpack.c.b16 %v2759, %v2759
      %v2888 = vpack.c.b16 %v2760, %v2760
      %v2889 = vpack.c.b16 %v2761, %v2761
      %v2890 = vpack.c.b16 %v2762, %v2762
      %v2891 = vpack.c.b16 %v2763, %v2763
      %v2892 = vpack.c.b16 %v2764, %v2764
      %v2893 = vpack.c.b16 %v2765, %v2765
      %v2894 = vpack.c.b16 %v2766, %v2766
      %v2895 = vpack.c.b16 %v2767, %v2767
      %v2896 = vpack.c.b16 %v2768, %v2768
      %v2897 = vpack.c.b16 %v2769, %v2769
      %v2898 = vpack.c.b16 %v2770, %v2770
      %v2899 = vpack.c.b16 %v2771, %v2771
      %v2900 = vpack.c.b16 %v2772, %v2772
      %v2901 = vpack.c.b16 %v2773, %v2773
      %v2902 = vpack.c.b16 %v2774, %v2774
      %v2903 = vpack.c.b16 %v2775, %v2775
      %v2904 = vpack.c.b16 %v2776, %v2776
      %v2905 = vpack.c.b16 %v2777, %v2777
      %v2906 = vpack.c.b16 %v2778, %v2778
      %v2907 = vpack.c.b16 %v2779, %v2779
      %v2908 = vpack.c.b16 %v2780, %v2780
      %v2909 = vpack.c.b16 %v2781, %v2781
      %v2910 = vpack.c.b16 %v2782, %v2782
      %v2911 = vpack.c.b16 %v2783, %v2783
      %v2912 = vpack.c.b16 %v2784, %v2784
      %v2913 = vpack.c.b16 %v2785, %v2785
      %v2914 = vpack.c.b16 %v2786, %v2786
      %v2915 = vpack.c.b16 %v2787, %v2787
      %v2916 = vpack.c.b16 %v2788, %v2788
      %v2917 = vpack.c.b16 %v2789, %v2789
      %v2918 = vpack.c.b16 %v2790, %v2790
      %v2919 = vpack.c.b16 %v2791, %v2791
      %v2920 = vpack.c.b16 %v2792, %v2792
      %v2921 = vpack.c.b16 %v2793, %v2793
      %v2922 = vpack.c.b16 %v2794, %v2794
      %v2923 = vpack.c.b16 %v2795, %v2795
      %v2924 = vpack.c.b16 %v2796, %v2796
      %v2925 = vpack.c.b16 %v2797, %v2797
      %v2926 = vpack.c.b16 %v2798, %v2798
      %v2927 = vpack.c.b16 %v2799, %v2799
      %v2928 = vpack.c.b16 %v2800, %v2800
      %v2929 = vpack.c.b16 %v2801, %v2801
      %v2930 = vpack.c.b16 %v2802, %v2802
      %v2931 = vpack.c.b16 %v2803, %v2803
      %v2932 = vpack.c.b16 %v2804, %v2804
      %v2933 = vpack.c.b16 %v2805, %v2805
      %v2934 = vpack.c.b16 %v2806, %v2806
      %v2935 = vpack.c.b16 %v2807, %v2807
      %v2936 = vpack.c.b16 %v2808, %v2808
      %v2937 = vpack.c.b16 %v2809, %v2809
      %v2938 = vpack.c.b16 %v2810, %v2810
      %v2939 = vpack.c.b16 %v2811, %v2811
      %v2940 = vpack.c.b16 %v2812, %v2812
      %v2941 = vpack.c.b16 %v2813, %v2813
      %v2942 = vpack.c.b16 %v2814, %v2814
      %v2943 = vpack.c.b16 %v2815, %v2815
      %v2944 = vpack.c.b16 %v2816, %v2816
      %v2945 = vpack.c.b16 %v2817, %v2817
      %v2946 = vpack.c.b16 %v2818, %v2818
      %v2947 = vpack.c.b16 %v2819, %v2819
      %v2948 = vpack.c.b16 %v2820, %v2820
      %v2949 = vpack.c.b16 %v2821, %v2821
      %v2950 = vpack.c.b16 %v2822, %v2822
      %v2951 = vpack.c.b16 %v2823, %v2823
      %v2952 = vpack.c.b16 %v2824, %v2824
      %v2953 = vpack.c.b16 %v2825, %v2825
      %v2954 = vpack.c.b16 %v2826, %v2826
      %v2955 = vpack.c.b16 %v2827, %v2827
      %v2956 = vpack.c.b16 %v2828, %v2828
      %v2957 = vpack.c.b16 %v2829, %v2829
      %v2958 = vpack.c.b16 %v2830, %v2830
      %v2959 = vpack.c.b16 %v2831, %v2831
      %v2960 = vpack.c.b16 %v2832, %v2832
      %v2961 = vpack.c.b16 %v2833, %v2833
      %v2962 = vpack.c.b16 %v2834, %v2834
      %v2963 = vpack.c.b16 %v2835, %v2835
      %v2964 = vpack.c.b16 %v2836, %v2836
      %v2965 = vpack.c.b16 %v2837, %v2837
      %v2966 = vpack.c.b16 %v2838, %v2838
      %3095 = vst [vmem:[%s172] sm:$0xf] %v2839
      %3096 = vst [vmem:[%s172 + $0x4] sm:$0xf] %v2840
      %3097 = vst [vmem:[%s172 + $0x8] sm:$0xf] %v2841
      %3098 = vst [vmem:[%s172 + $0xc] sm:$0xf] %v2842
      %3099 = vst [vmem:[%s172 + $0x10] sm:$0xf] %v2843
      %3100 = vst [vmem:[%s172 + $0x14] sm:$0xf] %v2844
      %3101 = vst [vmem:[%s172 + $0x18] sm:$0xf] %v2845
      %3102 = vst [vmem:[%s172 + $0x1c] sm:$0xf] %v2846
      %3103 = vst [vmem:[%s172 + $0x20] sm:$0xf] %v2847
      %3104 = vst [vmem:[%s172 + $0x24] sm:$0xf] %v2848
      %3105 = vst [vmem:[%s172 + $0x28] sm:$0xf] %v2849
      %3106 = vst [vmem:[%s172 + $0x2c] sm:$0xf] %v2850
      %3107 = vst [vmem:[%s172 + $0x30] sm:$0xf] %v2851
      %3108 = vst [vmem:[%s172 + $0x34] sm:$0xf] %v2852
      %3109 = vst [vmem:[%s172 + $0x38] sm:$0xf] %v2853
      %3110 = vst [vmem:[%s172 + $0x3c] sm:$0xf] %v2854
      %3111 = vst [vmem:[%s172 + $0x40] sm:$0xf] %v2855
      %3112 = vst [vmem:[%s172 + $0x44] sm:$0xf] %v2856
      %3113 = vst [vmem:[%s172 + $0x48] sm:$0xf] %v2857
      %3114 = vst [vmem:[%s172 + $0x4c] sm:$0xf] %v2858
      %3115 = vst [vmem:[%s172 + $0x50] sm:$0xf] %v2859
      %3116 = vst [vmem:[%s172 + $0x54] sm:$0xf] %v2860
      %3117 = vst [vmem:[%s172 + $0x58] sm:$0xf] %v2861
      %3118 = vst [vmem:[%s172 + $0x5c] sm:$0xf] %v2862
      %3119 = vst [vmem:[%s172 + $0x60] sm:$0xf] %v2863
      %3120 = vst [vmem:[%s172 + $0x64] sm:$0xf] %v2864
      %3121 = vst [vmem:[%s172 + $0x68] sm:$0xf] %v2865
      %3122 = vst [vmem:[%s172 + $0x6c] sm:$0xf] %v2866
      %3123 = vst [vmem:[%s172 + $0x70] sm:$0xf] %v2867
      %3124 = vst [vmem:[%s172 + $0x74] sm:$0xf] %v2868
      %3125 = vst [vmem:[%s172 + $0x78] sm:$0xf] %v2869
      %3126 = vst [vmem:[%s172 + $0x7c] sm:$0xf] %v2870
      %3127 = vst [vmem:[%s172 + $0x80] sm:$0xf] %v2871
      %3128 = vst [vmem:[%s172 + $0x84] sm:$0xf] %v2872
      %3129 = vst [vmem:[%s172 + $0x88] sm:$0xf] %v2873
      %3130 = vst [vmem:[%s172 + $0x8c] sm:$0xf] %v2874
      %3131 = vst [vmem:[%s172 + $0x90] sm:$0xf] %v2875
      %3132 = vst [vmem:[%s172 + $0x94] sm:$0xf] %v2876
      %3133 = vst [vmem:[%s172 + $0x98] sm:$0xf] %v2877
      %3134 = vst [vmem:[%s172 + $0x9c] sm:$0xf] %v2878
      %3135 = vst [vmem:[%s172 + $0xa0] sm:$0xf] %v2879
      %3136 = vst [vmem:[%s172 + $0xa4] sm:$0xf] %v2880
      %3137 = vst [vmem:[%s172 + $0xa8] sm:$0xf] %v2881
      %3138 = vst [vmem:[%s172 + $0xac] sm:$0xf] %v2882
      %3139 = vst [vmem:[%s172 + $0xb0] sm:$0xf] %v2883
      %3140 = vst [vmem:[%s172 + $0xb4] sm:$0xf] %v2884
      %3141 = vst [vmem:[%s172 + $0xb8] sm:$0xf] %v2885
      %3142 = vst [vmem:[%s172 + $0xbc] sm:$0xf] %v2886
      %3143 = vst [vmem:[%s172 + $0xc0] sm:$0xf] %v2887
      %3144 = vst [vmem:[%s172 + $0xc4] sm:$0xf] %v2888
      %3145 = vst [vmem:[%s172 + $0xc8] sm:$0xf] %v2889
      %3146 = vst [vmem:[%s172 + $0xcc] sm:$0xf] %v2890
      %3147 = vst [vmem:[%s172 + $0xd0] sm:$0xf] %v2891
      %3148 = vst [vmem:[%s172 + $0xd4] sm:$0xf] %v2892
      %3149 = vst [vmem:[%s172 + $0xd8] sm:$0xf] %v2893
      %3150 = vst [vmem:[%s172 + $0xdc] sm:$0xf] %v2894
      %3151 = vst [vmem:[%s172 + $0xe0] sm:$0xf] %v2895
      %3152 = vst [vmem:[%s172 + $0xe4] sm:$0xf] %v2896
      %3153 = vst [vmem:[%s172 + $0xe8] sm:$0xf] %v2897
      %3154 = vst [vmem:[%s172 + $0xec] sm:$0xf] %v2898
      %3155 = vst [vmem:[%s172 + $0xf0] sm:$0xf] %v2899
      %3156 = vst [vmem:[%s172 + $0xf4] sm:$0xf] %v2900
      %3157 = vst [vmem:[%s172 + $0xf8] sm:$0xf] %v2901
      %3158 = vst [vmem:[%s172 + $0xfc] sm:$0xf] %v2902
      %3159 = vst [vmem:[%s172 + $0x100] sm:$0xf] %v2903
      %3160 = vst [vmem:[%s172 + $0x104] sm:$0xf] %v2904
      %3161 = vst [vmem:[%s172 + $0x108] sm:$0xf] %v2905
      %3162 = vst [vmem:[%s172 + $0x10c] sm:$0xf] %v2906
      %3163 = vst [vmem:[%s172 + $0x110] sm:$0xf] %v2907
      %3164 = vst [vmem:[%s172 + $0x114] sm:$0xf] %v2908
      %3165 = vst [vmem:[%s172 + $0x118] sm:$0xf] %v2909
      %3166 = vst [vmem:[%s172 + $0x11c] sm:$0xf] %v2910
      %3167 = vst [vmem:[%s172 + $0x120] sm:$0xf] %v2911
      %3168 = vst [vmem:[%s172 + $0x124] sm:$0xf] %v2912
      %3169 = vst [vmem:[%s172 + $0x128] sm:$0xf] %v2913
      %3170 = vst [vmem:[%s172 + $0x12c] sm:$0xf] %v2914
      %3171 = vst [vmem:[%s172 + $0x130] sm:$0xf] %v2915
      %3172 = vst [vmem:[%s172 + $0x134] sm:$0xf] %v2916
      %3173 = vst [vmem:[%s172 + $0x138] sm:$0xf] %v2917
      %3174 = vst [vmem:[%s172 + $0x13c] sm:$0xf] %v2918
      %3175 = vst [vmem:[%s172 + $0x140] sm:$0xf] %v2919
      %3176 = vst [vmem:[%s172 + $0x144] sm:$0xf] %v2920
      %3177 = vst [vmem:[%s172 + $0x148] sm:$0xf] %v2921
      %3178 = vst [vmem:[%s172 + $0x14c] sm:$0xf] %v2922
      %3179 = vst [vmem:[%s172 + $0x150] sm:$0xf] %v2923
      %3180 = vst [vmem:[%s172 + $0x154] sm:$0xf] %v2924
      %3181 = vst [vmem:[%s172 + $0x158] sm:$0xf] %v2925
      %3182 = vst [vmem:[%s172 + $0x15c] sm:$0xf] %v2926
      %3183 = vst [vmem:[%s172 + $0x160] sm:$0xf] %v2927
      %3184 = vst [vmem:[%s172 + $0x164] sm:$0xf] %v2928
      %3185 = vst [vmem:[%s172 + $0x168] sm:$0xf] %v2929
      %3186 = vst [vmem:[%s172 + $0x16c] sm:$0xf] %v2930
      %3187 = vst [vmem:[%s172 + $0x170] sm:$0xf] %v2931
      %3188 = vst [vmem:[%s172 + $0x174] sm:$0xf] %v2932
      %3189 = vst [vmem:[%s172 + $0x178] sm:$0xf] %v2933
      %3190 = vst [vmem:[%s172 + $0x17c] sm:$0xf] %v2934
      %3191 = vst [vmem:[%s172 + $0x180] sm:$0xf] %v2935
      %3192 = vst [vmem:[%s172 + $0x184] sm:$0xf] %v2936
      %3193 = vst [vmem:[%s172 + $0x188] sm:$0xf] %v2937
      %3194 = vst [vmem:[%s172 + $0x18c] sm:$0xf] %v2938
      %3195 = vst [vmem:[%s172 + $0x190] sm:$0xf] %v2939
      %3196 = vst [vmem:[%s172 + $0x194] sm:$0xf] %v2940
      %3197 = vst [vmem:[%s172 + $0x198] sm:$0xf] %v2941
      %3198 = vst [vmem:[%s172 + $0x19c] sm:$0xf] %v2942
      %3199 = vst [vmem:[%s172 + $0x1a0] sm:$0xf] %v2943
      %3200 = vst [vmem:[%s172 + $0x1a4] sm:$0xf] %v2944
      %3201 = vst [vmem:[%s172 + $0x1a8] sm:$0xf] %v2945
      %3202 = vst [vmem:[%s172 + $0x1ac] sm:$0xf] %v2946
      %3203 = vst [vmem:[%s172 + $0x1b0] sm:$0xf] %v2947
      %3204 = vst [vmem:[%s172 + $0x1b4] sm:$0xf] %v2948
      %3205 = vst [vmem:[%s172 + $0x1b8] sm:$0xf] %v2949
      %3206 = vst [vmem:[%s172 + $0x1bc] sm:$0xf] %v2950
      %3207 = vst [vmem:[%s172 + $0x1c0] sm:$0xf] %v2951
      %3208 = vst [vmem:[%s172 + $0x1c4] sm:$0xf] %v2952
      %3209 = vst [vmem:[%s172 + $0x1c8] sm:$0xf] %v2953
      %3210 = vst [vmem:[%s172 + $0x1cc] sm:$0xf] %v2954
      %3211 = vst [vmem:[%s172 + $0x1d0] sm:$0xf] %v2955
      %3212 = vst [vmem:[%s172 + $0x1d4] sm:$0xf] %v2956
      %3213 = vst [vmem:[%s172 + $0x1d8] sm:$0xf] %v2957
      %3214 = vst [vmem:[%s172 + $0x1dc] sm:$0xf] %v2958
      %3215 = vst [vmem:[%s172 + $0x1e0] sm:$0xf] %v2959
      %3216 = vst [vmem:[%s172 + $0x1e4] sm:$0xf] %v2960
      %3217 = vst [vmem:[%s172 + $0x1e8] sm:$0xf] %v2961
      %3218 = vst [vmem:[%s172 + $0x1ec] sm:$0xf] %v2962
      %3219 = vst [vmem:[%s172 + $0x1f0] sm:$0xf] %v2963
      %3220 = vst [vmem:[%s172 + $0x1f4] sm:$0xf] %v2964
      %3221 = vst [vmem:[%s172 + $0x1f8] sm:$0xf] %v2965
      %3222 = vst [vmem:[%s172 + $0x1fc] sm:$0xf] %v2966
      %s3223 = smul.u32 128, %s14
      %p3224 = scmp.lt.s32.totalorder %s3223, 511
      %s3225 = scalar_select %p3224, %s3223, 511
      %s3226 = smul.addr %s3225, 4
      %s3227 = scalar_lea.vmem %s3, %s3226
      // Predicated region
      $region33: #{gated_conv_forward.1} parent=31 // pred_check
        %p3228 = pneg %p100
      $region34: #{gated_conv_forward.1} parent=31 // pred_check_branch
        %3230 = sbr.rel (%p3228) target = $region36
      $region35: #{gated_conv_forward.1} parent=31 // pred_region
        %s3231 = smul.u32 128, %s14
      $region36: #{gated_conv_forward.1} parent=31 // pred_fallthru
        _
    $region32: #{gated_conv_forward.1} parent=5 // pred_fallthru
      _
    %p3232 = scmp.le.s32.totalorder 2, %s9
    // Predicated region
    $region37: #{gated_conv_forward.1} parent=5 // pred_check
      %p3233 = pneg %p3232
    $region38: #{gated_conv_forward.1} parent=5 // pred_check_branch
      %3235 = sbr.rel (%p3233) target = $region40
    $region39: #{gated_conv_forward.1} parent=5 // pred_region
      %s3236 = ssub.s32 %s9, 2
      // Predicated region
      $region41: #{gated_conv_forward.1} parent=39 // pred_check
        %p3237 = pneg %p106
      $region42: #{gated_conv_forward.1} parent=39 // pred_check_branch
        %3239 = sbr.rel (%p3237) target = $region44
      $region43: #{gated_conv_forward.1} parent=39 // pred_region
        %s3240 = smul.u32 128, %s15
        %p3241 = scmp.lt.s32.totalorder %s3240, 511
        %s3242 = scalar_select %p3241, %s3240, 511
        %s3243 = smul.addr %s3242, 4
        %s3244 = scalar_lea.vmem %s3, %s3243
      $region44: #{gated_conv_forward.1} parent=39 // pred_fallthru
        _
    $region40: #{gated_conv_forward.1} parent=5 // pred_fallthru
      _
  $region6: #{gated_conv_forward.1} parent=0 // loop_footer
    %s13 = sadd.s32 1, %s9
  $region7: #{gated_conv_forward.1} parent=0 // loop_footer_branch
    %8 = sbr.rel target = $region3
  $region8: #{gated_conv_forward.1} parent=0 // loop_exit
    _

</llo_original>
